<compile_context>
chip_gen: v6e
topology: v6e:2x2x1
jax: 0.10.0
libtpu: 0.0.40
codegen_flags: <defaults>
</compile_context>

<pallas_src>
import numpy as np
import jax
import jax.numpy as jnp
from jax.experimental import pallas as pl
from jax.experimental.pallas import tpu as pltpu


def _round_up(v, m):
    return ((v + m - 1) // m) * m


def _vmem_capacity_bytes():
    """Physical VMEM per TensorCore; fall back to the smallest gen (v7x, 64 MiB)."""
    try:
        info = pltpu.get_tpu_info()
        cap = getattr(info, "vmem_capacity_bytes", None)
        if cap:
            return int(cap)
    except Exception:
        pass
    return 64 * 1024 * 1024


def _make_kernel(head_num, head_width, max_sent_len, fuse_sel):
    """Build the kernel body. head_width = len_a + len_b."""
    H, hw, L = head_num, head_width, max_sent_len

    if fuse_sel:
        # Single (hw, 2L) selector; split of the result is lane-aligned (L % 128 == 0).
        def kernel(x_ref, w_ref, b_ref, sel_ref, out_ref):
            x = x_ref[0]                                                   # (tile_s, F) bf16
            ab = jnp.dot(x, w_ref[...], preferred_element_type=jnp.float32)
            ab = ab + b_ref[...]                                           # (tile_s, H*hw) f32
            for h in range(H):                                             # static unroll
                ab_h = ab[:, h * hw:(h + 1) * hw]                          # (tile_s, hw)
                ex = jnp.dot(ab_h, sel_ref[...],
                             preferred_element_type=jnp.float32)           # (tile_s, 2L)
                out_ref[0, h] = (ex[:, :L] * ex[:, L:]).astype(out_ref.dtype)
    else:
        def kernel(x_ref, w_ref, b_ref, ra_ref, rb_ref, out_ref):
            x = x_ref[0]                                                   # (tile_s, F) bf16
            ab = jnp.dot(x, w_ref[...], preferred_element_type=jnp.float32)
            ab = ab + b_ref[...]                                           # (tile_s, H*hw) f32
            for h in range(H):                                             # static unroll
                ab_h = ab[:, h * hw:(h + 1) * hw]                          # (tile_s, hw)
                a_exp = jnp.dot(ab_h, ra_ref[...],
                                preferred_element_type=jnp.float32)        # (tile_s, L)
                b_exp = jnp.dot(ab_h, rb_ref[...],
                                preferred_element_type=jnp.float32)        # (tile_s, L)
                out_ref[0, h] = (a_exp * b_exp).astype(out_ref.dtype)
    return kernel


def dense_synthesizer_forward(x, wa_pt, ba, wb_pt, bb,
                              head_num, len_a, len_b, max_sent_len,
                              row_tile=1024, compute_dtype=jnp.bfloat16,
                              out_dtype=None, use_buffered_hint=True):
    """x: [B, S, F]; wa_pt: [H*len_a, F]; ba: [H*len_a]; wb_pt: [H*len_b, F]; bb: [H*len_b].

    Returns [B, H, S, max_sent_len] matching the PyTorch factorized forward.
    Pass out_dtype=jnp.bfloat16 to halve the (dominant) output HBM writeback.
    """
    B, S, F = x.shape
    H, L = head_num, max_sent_len
    la, lb = len_a, len_b
    hw = la + lb
    assert la * lb == L
    out_dtype = x.dtype if out_dtype is None else jnp.dtype(out_dtype)

    # ---- fused projection W_all [F, H*hw]; columns head-major, [a|b] within a head ----
    wa = jnp.transpose(wa_pt.reshape(H, la, F), (0, 2, 1))                  # [H, F, la]
    wb = jnp.transpose(wb_pt.reshape(H, lb, F), (0, 2, 1))                  # [H, F, lb]
    w_all = jnp.concatenate([wa, wb], axis=-1)                              # [H, F, hw]
    w_all = jnp.transpose(w_all, (1, 0, 2)).reshape(F, H * hw).astype(compute_dtype)
    b_all = jnp.concatenate([ba.reshape(H, la), bb.reshape(H, lb)], axis=-1)
    b_all = b_all.reshape(1, H * hw).astype(jnp.float32)                    # bias in f32

    # ---- exact one-hot expansion selectors (f32: expansion runs fully in f32) ----
    # a_exp[:, k] = a[:, k // lb];  b_exp[:, k] = b[:, k // la]
    k = np.arange(L)
    ra = np.zeros((hw, L), np.float32)
    ra[k // lb, k] = 1.0
    rb = np.zeros((hw, L), np.float32)
    rb[la + k // la, k] = 1.0
    fuse_sel = (L % 128 == 0)            # lane-aligned split of the fused result
    if fuse_sel:
        sels = (jnp.asarray(np.concatenate([ra, rb], axis=1)),)             # (hw, 2L)
    else:
        sels = (jnp.asarray(ra), jnp.asarray(rb))                            # 2 x (hw, L)

    # ---- VMEM-budget-aware sequence tile; avoid output padding/slice when possible ----
    cap = _vmem_capacity_bytes()
    vmem_cap = int(0.75 * cap)           # ~48 MiB on v7x, ~96 MiB on v5e/v6e
    cd = jnp.dtype(compute_dtype).itemsize
    od = jnp.dtype(out_dtype).itemsize
    const_bytes = (w_all.size * cd + b_all.size * 4
                   + sum(int(s.size) for s in sels) * 4)
    # per sequence row: double-buffered x + output tiles, plus f32 temporaries
    per_row = 2 * F * cd + 2 * H * L * od + H * hw * 4 + 4 * L * 4
    tile_budget = max(int(0.6 * vmem_cap) - 2 * const_bytes, 8 * per_row)
    tile_cap = max(8, min(_round_up(row_tile, 8), (tile_budget // per_row) // 8 * 8))

    if S <= tile_cap:
        tile_s, S_total = S, S           # one tile covers the whole sequence, no padding
    else:
        S_pad8 = _round_up(S, 8)
        t = min(tile_cap, S_pad8)
        while t > 8 and S_pad8 % t != 0:
            t -= 8
        if t >= max(8, tile_cap // 4):   # decent divisor found -> no extra padding
            tile_s, S_total = t, S_pad8
        else:                            # rare: pad and slice at the end (last resort)
            tile_s, S_total = tile_cap, _round_up(S, tile_cap)

    x_c = x.astype(compute_dtype)
    if S_total != S:
        x_c = jnp.pad(x_c, ((0, 0), (0, S_total - S), (0, 0)))

    grid = (B, S_total // tile_s)        # keep B * S_tiles >= 2 for v7x megacore use
    est = 2 * const_bytes + tile_s * per_row + (2 << 20)
    vmem_limit = int(min(max(2 * est, 32 * 1024 * 1024), vmem_cap))

    kernel = _make_kernel(H, hw, L, fuse_sel)

    def build(use_buffered):
        def const_spec(shape):
            n = len(shape)

            def idx(b, s):               # grid-constant block -> resident in VMEM
                return (0,) * n

            if use_buffered:
                # single buffer: no never-used second pipeline buffer for constants
                return pl.BlockSpec(shape, idx, pipeline_mode=pl.Buffered(1))
            return pl.BlockSpec(shape, idx)

        in_specs = [pl.BlockSpec((1, tile_s, F), lambda b, s: (b, s, 0))]    # x rows
        in_specs += [const_spec((F, H * hw)),                                # fused W (all heads)
                     const_spec((1, H * hw))]                                # fused bias
        in_specs += [const_spec(tuple(s.shape)) for s in sels]               # selectors

        return pl.pallas_call(
            kernel,
            out_shape=jax.ShapeDtypeStruct((B, H, S_total, L), out_dtype),
            grid_spec=pltpu.PrefetchScalarGridSpec(
                num_scalar_prefetch=0,
                grid=grid,
                in_specs=in_specs,
                out_specs=pl.BlockSpec((1, H, tile_s, L),
                                       lambda b, s: (b, 0, s, 0)),           # direct [B,H,S,L]
            ),
            compiler_params=pltpu.CompilerParams(
                dimension_semantics=("parallel", "parallel"),
                vmem_limit_bytes=vmem_limit,
            ),
        )

    args = (x_c, w_all, b_all) + sels
    if use_buffered_hint:
        try:
            out = build(True)(*args)
        except Exception:                # pipeline_mode hint unsupported -> plain specs
            out = build(False)(*args)
    else:
        out = build(False)(*args)

    if S_total != S:
        # TODO(synk): consumers that tolerate padded rows should take the padded buffer
        # directly; this slice re-materializes the (large) output in HBM.
        out = out[:, :, :S, :]
    return out


def reference_forward(x, wa_pt, ba, wb_pt, bb, head_num, len_a, len_b, max_sent_len):
    """Pure-JAX (f32) transcription of the PyTorch factorized forward."""
    B, S, _ = x.shape
    a = x @ wa_pt.T + ba                                   # [B, S, H*len_a]
    b = x @ wb_pt.T + bb                                   # [B, S, H*len_b]
    a = a.reshape(B, S, head_num, len_a, 1)
    b = b.reshape(B, S, head_num, len_b, 1)
    a = jnp.broadcast_to(a, (B, S, head_num, len_a, len_b)).reshape(B, S, head_num, max_sent_len)
    b = jnp.broadcast_to(b, (B, S, head_num, len_b, len_a)).reshape(B, S, head_num, max_sent_len)
    a = jnp.swapaxes(a, 1, 2)                              # [B, H, S, L]
    b = jnp.swapaxes(b, 1, 2)
    return a * b


if __name__ == "__main__":
    B, S, F = 2, 8, 32          # batch, seq len, feature_size
    H, len_a, len_b = 4, 4, 4   # head_num, factorized lengths
    L = len_a * len_b           # max_sent_len = 16

    key = jax.random.PRNGKey(0)
    k1, k2, k3, k4, k5 = jax.random.split(key, 5)
    bound = 1.0 / np.sqrt(F)    # PyTorch nn.Linear default init range
    wa_pt = jax.random.uniform(k1, (H * len_a, F), jnp.float32, -bound, bound)  # [out, in]
    ba = jax.random.uniform(k2, (H * len_a,), jnp.float32, -bound, bound)
    wb_pt = jax.random.uniform(k3, (H * len_b, F), jnp.float32, -bound, bound)
    bb = jax.random.uniform(k4, (H * len_b,), jnp.float32, -bound, bound)
    x = jax.random.normal(k5, (B, S, F), jnp.float32)

    ref = reference_forward(x, wa_pt, ba, wb_pt, bb, H, len_a, len_b, L)

    # Default output dtype (= x.dtype): exact layout/dtype parity with the module.
    out = dense_synthesizer_forward(x, wa_pt, ba, wb_pt, bb, H, len_a, len_b, L)
    out = jax.block_until_ready(out)
    assert out.shape == (B, H, S, L), out.shape
    # bf16 weights/activations with f32 accumulation -> relaxed tolerance vs f32 reference
    np.testing.assert_allclose(np.asarray(out), np.asarray(ref), rtol=2e-2, atol=2e-2)

    # bf16 output path (halves output HBM writeback, the dominant cost at scale).
    out_bf16 = dense_synthesizer_forward(x, wa_pt, ba, wb_pt, bb, H, len_a, len_b, L,
                                         out_dtype=jnp.bfloat16)
    out_bf16 = jax.block_until_ready(out_bf16)
    assert out_bf16.dtype == jnp.bfloat16 and out_bf16.shape == (B, H, S, L)
    np.testing.assert_allclose(np.asarray(out_bf16, dtype=np.float32), np.asarray(ref),
                               rtol=5e-2, atol=5e-2)

    print("KERNEL_OK")
</pallas_src>

<mosaic_0001>
module attributes {stable_mosaic.version = 11 : i64} {
  func.func @kernel(%arg0: i32, %arg1: i32, %arg2: memref<1x8x32xbf16, #tpu.memory_space<vmem>>, %arg3: memref<32x32xbf16, #tpu.memory_space<vmem>>, %arg4: memref<1x32xf32, #tpu.memory_space<vmem>>, %arg5: memref<8x16xf32, #tpu.memory_space<vmem>>, %arg6: memref<8x16xf32, #tpu.memory_space<vmem>>, %arg7: memref<1x4x8x16xf32, #tpu.memory_space<vmem>>) attributes {dimension_semantics = [#tpu.dimension_semantics<parallel>, #tpu.dimension_semantics<parallel>], iteration_bounds = array<i64: 2, 1>, scalar_prefetch = 0 : i64, scratch_operands = 0 : i64, tpu.core_type = #tpu.core_type<tc>, window_params = [{transform_indices = @transform_0, window_bounds = array<i64: 1, 8, 32>}, {pipeline_mode = #tpu.pipeline_mode<synchronous>, transform_indices = @transform_1, window_bounds = array<i64: 32, 32>}, {pipeline_mode = #tpu.pipeline_mode<synchronous>, transform_indices = @transform_2, window_bounds = array<i64: 1, 32>}, {pipeline_mode = #tpu.pipeline_mode<synchronous>, transform_indices = @transform_3, window_bounds = array<i64: 8, 16>}, {pipeline_mode = #tpu.pipeline_mode<synchronous>, transform_indices = @transform_4, window_bounds = array<i64: 8, 16>}, {transform_indices = @transform_5, window_bounds = array<i64: 1, 4, 8, 16>}]} {
    %c0 = arith.constant 0 : index
    %c0_0 = arith.constant 0 : index
    %c0_1 = arith.constant 0 : index
    %0 = vector.load %arg2[%c0, %c0_0, %c0_1] : memref<1x8x32xbf16, #tpu.memory_space<vmem>>, vector<1x8x32xbf16>
    %1 = vector.shape_cast %0 : vector<1x8x32xbf16> to vector<8x32xbf16>
    %c0_2 = arith.constant 0 : index
    %c0_3 = arith.constant 0 : index
    %2 = vector.load %arg3[%c0_2, %c0_3] : memref<32x32xbf16, #tpu.memory_space<vmem>>, vector<32x32xbf16>
    %cst = arith.constant dense<0.000000e+00> : vector<8x32xf32>
    %3 = tpu.matmul %1, %2, %cst {dimension_numbers = #tpu.dot_dimension_numbers<[1], [0], [0], [1], [0, 0, 1, 1], [], []>} : vector<8x32xbf16>, vector<32x32xbf16>, vector<8x32xf32> -> vector<8x32xf32>
    %c0_4 = arith.constant 0 : index
    %c0_5 = arith.constant 0 : index
    %4 = vector.load %arg4[%c0_4, %c0_5] : memref<1x32xf32, #tpu.memory_space<vmem>>, vector<1x32xf32>
    %5 = vector.broadcast %4 : vector<1x32xf32> to vector<8x32xf32>
    %6 = arith.addf %3, %5 : vector<8x32xf32>
    %7 = vector.extract_strided_slice %6 {offsets = [0, 0], sizes = [8, 8], strides = [1, 1]} : vector<8x32xf32> to vector<8x8xf32>
    %c0_6 = arith.constant 0 : index
    %c0_7 = arith.constant 0 : index
    %8 = vector.load %arg5[%c0_6, %c0_7] : memref<8x16xf32, #tpu.memory_space<vmem>>, vector<8x16xf32>
    %cst_8 = arith.constant dense<0.000000e+00> : vector<8x16xf32>
    %9 = tpu.matmul %7, %8, %cst_8 {dimension_numbers = #tpu.dot_dimension_numbers<[1], [0], [0], [1], [0, 0, 1, 1], [], []>} : vector<8x8xf32>, vector<8x16xf32>, vector<8x16xf32> -> vector<8x16xf32>
    %c0_9 = arith.constant 0 : index
    %c0_10 = arith.constant 0 : index
    %10 = vector.load %arg6[%c0_9, %c0_10] : memref<8x16xf32, #tpu.memory_space<vmem>>, vector<8x16xf32>
    %cst_11 = arith.constant dense<0.000000e+00> : vector<8x16xf32>
    %11 = tpu.matmul %7, %10, %cst_11 {dimension_numbers = #tpu.dot_dimension_numbers<[1], [0], [0], [1], [0, 0, 1, 1], [], []>} : vector<8x8xf32>, vector<8x16xf32>, vector<8x16xf32> -> vector<8x16xf32>
    %12 = arith.mulf %9, %11 : vector<8x16xf32>
    %c0_12 = arith.constant 0 : index
    %c0_13 = arith.constant 0 : index
    %c0_14 = arith.constant 0 : index
    %c0_15 = arith.constant 0 : index
    %13 = vector.load %arg7[%c0_12, %c0_13, %c0_14, %c0_15] : memref<1x4x8x16xf32, #tpu.memory_space<vmem>>, vector<1x1x8x16xf32>
    %14 = vector.shape_cast %13 : vector<1x1x8x16xf32> to vector<8x16xf32>
    %15 = vector.shape_cast %12 : vector<8x16xf32> to vector<1x1x8x16xf32>
    tpu.vector_store %arg7[%c0_12, %c0_13, %c0_14, %c0_15], %15 {strides = array<i32>} : memref<1x4x8x16xf32, #tpu.memory_space<vmem>>, vector<1x1x8x16xf32>,
    %16 = vector.extract_strided_slice %6 {offsets = [0, 8], sizes = [8, 8], strides = [1, 1]} : vector<8x32xf32> to vector<8x8xf32>
    %c0_16 = arith.constant 0 : index
    %c0_17 = arith.constant 0 : index
    %17 = vector.load %arg5[%c0_16, %c0_17] : memref<8x16xf32, #tpu.memory_space<vmem>>, vector<8x16xf32>
    %cst_18 = arith.constant dense<0.000000e+00> : vector<8x16xf32>
    %18 = tpu.matmul %16, %17, %cst_18 {dimension_numbers = #tpu.dot_dimension_numbers<[1], [0], [0], [1], [0, 0, 1, 1], [], []>} : vector<8x8xf32>, vector<8x16xf32>, vector<8x16xf32> -> vector<8x16xf32>
    %c0_19 = arith.constant 0 : index
    %c0_20 = arith.constant 0 : index
    %19 = vector.load %arg6[%c0_19, %c0_20] : memref<8x16xf32, #tpu.memory_space<vmem>>, vector<8x16xf32>
    %cst_21 = arith.constant dense<0.000000e+00> : vector<8x16xf32>
    %20 = tpu.matmul %16, %19, %cst_21 {dimension_numbers = #tpu.dot_dimension_numbers<[1], [0], [0], [1], [0, 0, 1, 1], [], []>} : vector<8x8xf32>, vector<8x16xf32>, vector<8x16xf32> -> vector<8x16xf32>
    %21 = arith.mulf %18, %20 : vector<8x16xf32>
    %c0_22 = arith.constant 0 : index
    %c1 = arith.constant 1 : index
    %c0_23 = arith.constant 0 : index
    %c0_24 = arith.constant 0 : index
    %22 = vector.load %arg7[%c0_22, %c1, %c0_23, %c0_24] : memref<1x4x8x16xf32, #tpu.memory_space<vmem>>, vector<1x1x8x16xf32>
    %23 = vector.shape_cast %22 : vector<1x1x8x16xf32> to vector<8x16xf32>
    %24 = vector.shape_cast %21 : vector<8x16xf32> to vector<1x1x8x16xf32>
    tpu.vector_store %arg7[%c0_22, %c1, %c0_23, %c0_24], %24 {strides = array<i32>} : memref<1x4x8x16xf32, #tpu.memory_space<vmem>>, vector<1x1x8x16xf32>,
    %25 = vector.extract_strided_slice %6 {offsets = [0, 16], sizes = [8, 8], strides = [1, 1]} : vector<8x32xf32> to vector<8x8xf32>
    %c0_25 = arith.constant 0 : index
    %c0_26 = arith.constant 0 : index
    %26 = vector.load %arg5[%c0_25, %c0_26] : memref<8x16xf32, #tpu.memory_space<vmem>>, vector<8x16xf32>
    %cst_27 = arith.constant dense<0.000000e+00> : vector<8x16xf32>
    %27 = tpu.matmul %25, %26, %cst_27 {dimension_numbers = #tpu.dot_dimension_numbers<[1], [0], [0], [1], [0, 0, 1, 1], [], []>} : vector<8x8xf32>, vector<8x16xf32>, vector<8x16xf32> -> vector<8x16xf32>
    %c0_28 = arith.constant 0 : index
    %c0_29 = arith.constant 0 : index
    %28 = vector.load %arg6[%c0_28, %c0_29] : memref<8x16xf32, #tpu.memory_space<vmem>>, vector<8x16xf32>
    %cst_30 = arith.constant dense<0.000000e+00> : vector<8x16xf32>
    %29 = tpu.matmul %25, %28, %cst_30 {dimension_numbers = #tpu.dot_dimension_numbers<[1], [0], [0], [1], [0, 0, 1, 1], [], []>} : vector<8x8xf32>, vector<8x16xf32>, vector<8x16xf32> -> vector<8x16xf32>
    %30 = arith.mulf %27, %29 : vector<8x16xf32>
    %c0_31 = arith.constant 0 : index
    %c2 = arith.constant 2 : index
    %c0_32 = arith.constant 0 : index
    %c0_33 = arith.constant 0 : index
    %31 = vector.load %arg7[%c0_31, %c2, %c0_32, %c0_33] : memref<1x4x8x16xf32, #tpu.memory_space<vmem>>, vector<1x1x8x16xf32>
    %32 = vector.shape_cast %31 : vector<1x1x8x16xf32> to vector<8x16xf32>
    %33 = vector.shape_cast %30 : vector<8x16xf32> to vector<1x1x8x16xf32>
    tpu.vector_store %arg7[%c0_31, %c2, %c0_32, %c0_33], %33 {strides = array<i32>} : memref<1x4x8x16xf32, #tpu.memory_space<vmem>>, vector<1x1x8x16xf32>,
    %34 = vector.extract_strided_slice %6 {offsets = [0, 24], sizes = [8, 8], strides = [1, 1]} : vector<8x32xf32> to vector<8x8xf32>
    %c0_34 = arith.constant 0 : index
    %c0_35 = arith.constant 0 : index
    %35 = vector.load %arg5[%c0_34, %c0_35] : memref<8x16xf32, #tpu.memory_space<vmem>>, vector<8x16xf32>
    %cst_36 = arith.constant dense<0.000000e+00> : vector<8x16xf32>
    %36 = tpu.matmul %34, %35, %cst_36 {dimension_numbers = #tpu.dot_dimension_numbers<[1], [0], [0], [1], [0, 0, 1, 1], [], []>} : vector<8x8xf32>, vector<8x16xf32>, vector<8x16xf32> -> vector<8x16xf32>
    %c0_37 = arith.constant 0 : index
    %c0_38 = arith.constant 0 : index
    %37 = vector.load %arg6[%c0_37, %c0_38] : memref<8x16xf32, #tpu.memory_space<vmem>>, vector<8x16xf32>
    %cst_39 = arith.constant dense<0.000000e+00> : vector<8x16xf32>
    %38 = tpu.matmul %34, %37, %cst_39 {dimension_numbers = #tpu.dot_dimension_numbers<[1], [0], [0], [1], [0, 0, 1, 1], [], []>} : vector<8x8xf32>, vector<8x16xf32>, vector<8x16xf32> -> vector<8x16xf32>
    %39 = arith.mulf %36, %38 : vector<8x16xf32>
    %c0_40 = arith.constant 0 : index
    %c3 = arith.constant 3 : index
    %c0_41 = arith.constant 0 : index
    %c0_42 = arith.constant 0 : index
    %40 = vector.load %arg7[%c0_40, %c3, %c0_41, %c0_42] : memref<1x4x8x16xf32, #tpu.memory_space<vmem>>, vector<1x1x8x16xf32>
    %41 = vector.shape_cast %40 : vector<1x1x8x16xf32> to vector<8x16xf32>
    %42 = vector.shape_cast %39 : vector<8x16xf32> to vector<1x1x8x16xf32>
    tpu.vector_store %arg7[%c0_40, %c3, %c0_41, %c0_42], %42 {strides = array<i32>} : memref<1x4x8x16xf32, #tpu.memory_space<vmem>>, vector<1x1x8x16xf32>,
    return
  }
  func.func @transform_0(%arg0: i32, %arg1: i32) -> (i32, i32, i32) {
    %c0_i32 = arith.constant 0 : i32
    %c0_i32_0 = arith.constant 0 : i32
    return %arg0, %arg1, %c0_i32 : i32, i32, i32
  }
  func.func @transform_1(%arg0: i32, %arg1: i32) -> (i32, i32) {
    %c0_i32 = arith.constant 0 : i32
    %c0_i32_0 = arith.constant 0 : i32
    %c0_i32_1 = arith.constant 0 : i32
    return %c0_i32, %c0_i32_0 : i32, i32
  }
  func.func @transform_2(%arg0: i32, %arg1: i32) -> (i32, i32) {
    %c0_i32 = arith.constant 0 : i32
    %c0_i32_0 = arith.constant 0 : i32
    %c0_i32_1 = arith.constant 0 : i32
    return %c0_i32, %c0_i32_0 : i32, i32
  }
  func.func @transform_3(%arg0: i32, %arg1: i32) -> (i32, i32) {
    %c0_i32 = arith.constant 0 : i32
    %c0_i32_0 = arith.constant 0 : i32
    %c0_i32_1 = arith.constant 0 : i32
    return %c0_i32, %c0_i32_0 : i32, i32
  }
  func.func @transform_4(%arg0: i32, %arg1: i32) -> (i32, i32) {
    %c0_i32 = arith.constant 0 : i32
    %c0_i32_0 = arith.constant 0 : i32
    %c0_i32_1 = arith.constant 0 : i32
    return %c0_i32, %c0_i32_0 : i32, i32
  }
  func.func @transform_5(%arg0: i32, %arg1: i32) -> (i32, i32, i32, i32) {
    %c0_i32 = arith.constant 0 : i32
    %c0_i32_0 = arith.constant 0 : i32
    %c0_i32_1 = arith.constant 0 : i32
    return %arg0, %c0_i32, %arg1, %c0_i32_0 : i32, i32, i32, i32
  }
}

module attributes {stable_mosaic.version = 11 : i64} {
  func.func @kernel(%arg0: i32, %arg1: i32, %arg2: memref<1x8x32xbf16, #tpu.memory_space<vmem>>, %arg3: memref<32x32xbf16, #tpu.memory_space<vmem>>, %arg4: memref<1x32xf32, #tpu.memory_space<vmem>>, %arg5: memref<8x16xf32, #tpu.memory_space<vmem>>, %arg6: memref<8x16xf32, #tpu.memory_space<vmem>>, %arg7: memref<1x4x8x16xf32, #tpu.memory_space<vmem>>) attributes {dimension_semantics = [#tpu.dimension_semantics<parallel>, #tpu.dimension_semantics<parallel>], iteration_bounds = array<i64: 2, 1>, scalar_prefetch = 0 : i64, scratch_operands = 0 : i64, tpu.core_type = #tpu.core_type<tc>, window_params = [{transform_indices = @transform_0, window_bounds = array<i64: 1, 8, 32>}, {pipeline_mode = #tpu.pipeline_mode<synchronous>, transform_indices = @transform_1, window_bounds = array<i64: 32, 32>}, {pipeline_mode = #tpu.pipeline_mode<synchronous>, transform_indices = @transform_2, window_bounds = array<i64: 1, 32>}, {pipeline_mode = #tpu.pipeline_mode<synchronous>, transform_indices = @transform_3, window_bounds = array<i64: 8, 16>}, {pipeline_mode = #tpu.pipeline_mode<synchronous>, transform_indices = @transform_4, window_bounds = array<i64: 8, 16>}, {transform_indices = @transform_5, window_bounds = array<i64: 1, 4, 8, 16>}]} {
    %c0 = arith.constant 0 : index
    %c0_0 = arith.constant 0 : index
    %c0_1 = arith.constant 0 : index
    %0 = vector.load %arg2[%c0, %c0_0, %c0_1] : memref<1x8x32xbf16, #tpu.memory_space<vmem>>, vector<1x8x32xbf16>
    %1 = vector.shape_cast %0 : vector<1x8x32xbf16> to vector<8x32xbf16>
    %c0_2 = arith.constant 0 : index
    %c0_3 = arith.constant 0 : index
    %2 = vector.load %arg3[%c0_2, %c0_3] : memref<32x32xbf16, #tpu.memory_space<vmem>>, vector<32x32xbf16>
    %cst = arith.constant dense<0.000000e+00> : vector<8x32xf32>
    %3 = tpu.matmul %1, %2, %cst {dimension_numbers = #tpu.dot_dimension_numbers<[1], [0], [0], [1], [0, 0, 1, 1], [], []>} : vector<8x32xbf16>, vector<32x32xbf16>, vector<8x32xf32> -> vector<8x32xf32>
    %c0_4 = arith.constant 0 : index
    %c0_5 = arith.constant 0 : index
    %4 = vector.load %arg4[%c0_4, %c0_5] : memref<1x32xf32, #tpu.memory_space<vmem>>, vector<1x32xf32>
    %5 = vector.broadcast %4 : vector<1x32xf32> to vector<8x32xf32>
    %6 = arith.addf %3, %5 : vector<8x32xf32>
    %7 = vector.extract_strided_slice %6 {offsets = [0, 0], sizes = [8, 8], strides = [1, 1]} : vector<8x32xf32> to vector<8x8xf32>
    %c0_6 = arith.constant 0 : index
    %c0_7 = arith.constant 0 : index
    %8 = vector.load %arg5[%c0_6, %c0_7] : memref<8x16xf32, #tpu.memory_space<vmem>>, vector<8x16xf32>
    %cst_8 = arith.constant dense<0.000000e+00> : vector<8x16xf32>
    %9 = tpu.matmul %7, %8, %cst_8 {dimension_numbers = #tpu.dot_dimension_numbers<[1], [0], [0], [1], [0, 0, 1, 1], [], []>} : vector<8x8xf32>, vector<8x16xf32>, vector<8x16xf32> -> vector<8x16xf32>
    %c0_9 = arith.constant 0 : index
    %c0_10 = arith.constant 0 : index
    %10 = vector.load %arg6[%c0_9, %c0_10] : memref<8x16xf32, #tpu.memory_space<vmem>>, vector<8x16xf32>
    %cst_11 = arith.constant dense<0.000000e+00> : vector<8x16xf32>
    %11 = tpu.matmul %7, %10, %cst_11 {dimension_numbers = #tpu.dot_dimension_numbers<[1], [0], [0], [1], [0, 0, 1, 1], [], []>} : vector<8x8xf32>, vector<8x16xf32>, vector<8x16xf32> -> vector<8x16xf32>
    %12 = arith.mulf %9, %11 : vector<8x16xf32>
    %c0_12 = arith.constant 0 : index
    %c0_13 = arith.constant 0 : index
    %c0_14 = arith.constant 0 : index
    %c0_15 = arith.constant 0 : index
    %13 = vector.load %arg7[%c0_12, %c0_13, %c0_14, %c0_15] : memref<1x4x8x16xf32, #tpu.memory_space<vmem>>, vector<1x1x8x16xf32>
    %14 = vector.shape_cast %13 : vector<1x1x8x16xf32> to vector<8x16xf32>
    %15 = vector.shape_cast %12 : vector<8x16xf32> to vector<1x1x8x16xf32>
    tpu.vector_store %arg7[%c0_12, %c0_13, %c0_14, %c0_15], %15 {strides = array<i32>} : memref<1x4x8x16xf32, #tpu.memory_space<vmem>>, vector<1x1x8x16xf32>,
    %16 = vector.extract_strided_slice %6 {offsets = [0, 8], sizes = [8, 8], strides = [1, 1]} : vector<8x32xf32> to vector<8x8xf32>
    %c0_16 = arith.constant 0 : index
    %c0_17 = arith.constant 0 : index
    %17 = vector.load %arg5[%c0_16, %c0_17] : memref<8x16xf32, #tpu.memory_space<vmem>>, vector<8x16xf32>
    %cst_18 = arith.constant dense<0.000000e+00> : vector<8x16xf32>
    %18 = tpu.matmul %16, %17, %cst_18 {dimension_numbers = #tpu.dot_dimension_numbers<[1], [0], [0], [1], [0, 0, 1, 1], [], []>} : vector<8x8xf32>, vector<8x16xf32>, vector<8x16xf32> -> vector<8x16xf32>
    %c0_19 = arith.constant 0 : index
    %c0_20 = arith.constant 0 : index
    %19 = vector.load %arg6[%c0_19, %c0_20] : memref<8x16xf32, #tpu.memory_space<vmem>>, vector<8x16xf32>
    %cst_21 = arith.constant dense<0.000000e+00> : vector<8x16xf32>
    %20 = tpu.matmul %16, %19, %cst_21 {dimension_numbers = #tpu.dot_dimension_numbers<[1], [0], [0], [1], [0, 0, 1, 1], [], []>} : vector<8x8xf32>, vector<8x16xf32>, vector<8x16xf32> -> vector<8x16xf32>
    %21 = arith.mulf %18, %20 : vector<8x16xf32>
    %c0_22 = arith.constant 0 : index
    %c1 = arith.constant 1 : index
    %c0_23 = arith.constant 0 : index
    %c0_24 = arith.constant 0 : index
    %22 = vector.load %arg7[%c0_22, %c1, %c0_23, %c0_24] : memref<1x4x8x16xf32, #tpu.memory_space<vmem>>, vector<1x1x8x16xf32>
    %23 = vector.shape_cast %22 : vector<1x1x8x16xf32> to vector<8x16xf32>
    %24 = vector.shape_cast %21 : vector<8x16xf32> to vector<1x1x8x16xf32>
    tpu.vector_store %arg7[%c0_22, %c1, %c0_23, %c0_24], %24 {strides = array<i32>} : memref<1x4x8x16xf32, #tpu.memory_space<vmem>>, vector<1x1x8x16xf32>,
    %25 = vector.extract_strided_slice %6 {offsets = [0, 16], sizes = [8, 8], strides = [1, 1]} : vector<8x32xf32> to vector<8x8xf32>
    %c0_25 = arith.constant 0 : index
    %c0_26 = arith.constant 0 : index
    %26 = vector.load %arg5[%c0_25, %c0_26] : memref<8x16xf32, #tpu.memory_space<vmem>>, vector<8x16xf32>
    %cst_27 = arith.constant dense<0.000000e+00> : vector<8x16xf32>
    %27 = tpu.matmul %25, %26, %cst_27 {dimension_numbers = #tpu.dot_dimension_numbers<[1], [0], [0], [1], [0, 0, 1, 1], [], []>} : vector<8x8xf32>, vector<8x16xf32>, vector<8x16xf32> -> vector<8x16xf32>
    %c0_28 = arith.constant 0 : index
    %c0_29 = arith.constant 0 : index
    %28 = vector.load %arg6[%c0_28, %c0_29] : memref<8x16xf32, #tpu.memory_space<vmem>>, vector<8x16xf32>
    %cst_30 = arith.constant dense<0.000000e+00> : vector<8x16xf32>
    %29 = tpu.matmul %25, %28, %cst_30 {dimension_numbers = #tpu.dot_dimension_numbers<[1], [0], [0], [1], [0, 0, 1, 1], [], []>} : vector<8x8xf32>, vector<8x16xf32>, vector<8x16xf32> -> vector<8x16xf32>
    %30 = arith.mulf %27, %29 : vector<8x16xf32>
    %c0_31 = arith.constant 0 : index
    %c2 = arith.constant 2 : index
    %c0_32 = arith.constant 0 : index
    %c0_33 = arith.constant 0 : index
    %31 = vector.load %arg7[%c0_31, %c2, %c0_32, %c0_33] : memref<1x4x8x16xf32, #tpu.memory_space<vmem>>, vector<1x1x8x16xf32>
    %32 = vector.shape_cast %31 : vector<1x1x8x16xf32> to vector<8x16xf32>
    %33 = vector.shape_cast %30 : vector<8x16xf32> to vector<1x1x8x16xf32>
    tpu.vector_store %arg7[%c0_31, %c2, %c0_32, %c0_33], %33 {strides = array<i32>} : memref<1x4x8x16xf32, #tpu.memory_space<vmem>>, vector<1x1x8x16xf32>,
    %34 = vector.extract_strided_slice %6 {offsets = [0, 24], sizes = [8, 8], strides = [1, 1]} : vector<8x32xf32> to vector<8x8xf32>
    %c0_34 = arith.constant 0 : index
    %c0_35 = arith.constant 0 : index
    %35 = vector.load %arg5[%c0_34, %c0_35] : memref<8x16xf32, #tpu.memory_space<vmem>>, vector<8x16xf32>
    %cst_36 = arith.constant dense<0.000000e+00> : vector<8x16xf32>
    %36 = tpu.matmul %34, %35, %cst_36 {dimension_numbers = #tpu.dot_dimension_numbers<[1], [0], [0], [1], [0, 0, 1, 1], [], []>} : vector<8x8xf32>, vector<8x16xf32>, vector<8x16xf32> -> vector<8x16xf32>
    %c0_37 = arith.constant 0 : index
    %c0_38 = arith.constant 0 : index
    %37 = vector.load %arg6[%c0_37, %c0_38] : memref<8x16xf32, #tpu.memory_space<vmem>>, vector<8x16xf32>
    %cst_39 = arith.constant dense<0.000000e+00> : vector<8x16xf32>
    %38 = tpu.matmul %34, %37, %cst_39 {dimension_numbers = #tpu.dot_dimension_numbers<[1], [0], [0], [1], [0, 0, 1, 1], [], []>} : vector<8x8xf32>, vector<8x16xf32>, vector<8x16xf32> -> vector<8x16xf32>
    %39 = arith.mulf %36, %38 : vector<8x16xf32>
    %c0_40 = arith.constant 0 : index
    %c3 = arith.constant 3 : index
    %c0_41 = arith.constant 0 : index
    %c0_42 = arith.constant 0 : index
    %40 = vector.load %arg7[%c0_40, %c3, %c0_41, %c0_42] : memref<1x4x8x16xf32, #tpu.memory_space<vmem>>, vector<1x1x8x16xf32>
    %41 = vector.shape_cast %40 : vector<1x1x8x16xf32> to vector<8x16xf32>
    %42 = vector.shape_cast %39 : vector<8x16xf32> to vector<1x1x8x16xf32>
    tpu.vector_store %arg7[%c0_40, %c3, %c0_41, %c0_42], %42 {strides = array<i32>} : memref<1x4x8x16xf32, #tpu.memory_space<vmem>>, vector<1x1x8x16xf32>,
    return
  }
  func.func @transform_0(%arg0: i32, %arg1: i32) -> (i32, i32, i32) {
    %c0_i32 = arith.constant 0 : i32
    %c0_i32_0 = arith.constant 0 : i32
    return %arg0, %arg1, %c0_i32 : i32, i32, i32
  }
  func.func @transform_1(%arg0: i32, %arg1: i32) -> (i32, i32) {
    %c0_i32 = arith.constant 0 : i32
    %c0_i32_0 = arith.constant 0 : i32
    %c0_i32_1 = arith.constant 0 : i32
    return %c0_i32, %c0_i32_0 : i32, i32
  }
  func.func @transform_2(%arg0: i32, %arg1: i32) -> (i32, i32) {
    %c0_i32 = arith.constant 0 : i32
    %c0_i32_0 = arith.constant 0 : i32
    %c0_i32_1 = arith.constant 0 : i32
    return %c0_i32, %c0_i32_0 : i32, i32
  }
  func.func @transform_3(%arg0: i32, %arg1: i32) -> (i32, i32) {
    %c0_i32 = arith.constant 0 : i32
    %c0_i32_0 = arith.constant 0 : i32
    %c0_i32_1 = arith.constant 0 : i32
    return %c0_i32, %c0_i32_0 : i32, i32
  }
  func.func @transform_4(%arg0: i32, %arg1: i32) -> (i32, i32) {
    %c0_i32 = arith.constant 0 : i32
    %c0_i32_0 = arith.constant 0 : i32
    %c0_i32_1 = arith.constant 0 : i32
    return %c0_i32, %c0_i32_0 : i32, i32
  }
  func.func @transform_5(%arg0: i32, %arg1: i32) -> (i32, i32, i32, i32) {
    %c0_i32 = arith.constant 0 : i32
    %c0_i32_0 = arith.constant 0 : i32
    %c0_i32_1 = arith.constant 0 : i32
    return %arg0, %c0_i32, %arg1, %c0_i32_0 : i32, i32, i32, i32
  }
}

</mosaic_0001>

<llo_original>
// kernel: tpu_custom_call.1
$region0: #{tpu_custom_call.1}
  #allocation0 [shape = 'u32[]', space=smem, size = 0x4, offset = 0x4, fixed_abs, tag = 'smem constant byte address 0x4 - core index']
  #allocation1 [shape = 'u32[144,128]{1,0:T(1,128)}', space=vmem, size = 0x12000, scoped, tag = 'internal scratch']
  %s0 = inlined_call_operand.hbm [shape: bf16[2,8,32], index: 0, kind: input, shape index: {}]
  %s1 = inlined_call_operand.hbm [shape: bf16[32,32], index: 1, kind: input, shape index: {}]
  %s2 = inlined_call_operand.vmem [shape: f32[1,32], index: 2, kind: input, shape index: {}]
  %s3 = inlined_call_operand.hbm [shape: f32[8,16], index: 3, kind: input, shape index: {}]
  %s4 = inlined_call_operand.hbm [shape: f32[8,16], index: 4, kind: input, shape index: {}]
  %s5 = inlined_call_operand.hbm [shape: f32[2,4,8,16], index: 5, kind: output, shape index: {}]
  %s6 = sld [smem:[#allocation0]]
  $region69: #{tpu_custom_call.1} parent=0
    _
  %s8 = ssub.s32 1, %s6
  %s9 = scalar_select 0, %s8, %s6
  $region1: #{tpu_custom_call.1} parent=0
    #allocation2 [shape = 'u8[4096]{0}', space=vmem, size = 0x1000, scoped, tag = 'input window, operand 0']
    #allocation3 [shape = 's32[2]{0}', space=sflag, size = 0x8, scoped, tag = 'scoped memory for tpu_custom_call.1']
    #allocation4 [shape = 's32[2]{0}', space=sflag, size = 0x8, scoped, tag = 'scoped memory for tpu_custom_call.1']
    #allocation5 [shape = 'u8[8192]{0}', space=vmem, size = 0x2000, scoped, tag = 'input window, operand 1, single buffered']
    #allocation6 [shape = 's32[1]{0}', space=sflag, size = 0x4, scoped, tag = 'scoped memory for tpu_custom_call.1']
    #allocation7 [shape = 'u8[4096]{0}', space=vmem, size = 0x1000, scoped, tag = 'input window, operand 3, single buffered']
    #allocation8 [shape = 'u8[4096]{0}', space=vmem, size = 0x1000, scoped, tag = 'input window, operand 4, single buffered']
    #allocation9 [shape = 's32[1]{0}', space=sflag, size = 0x4, scoped, tag = 'scoped memory for tpu_custom_call.1']
    #allocation10 [shape = 'u8[32768]{0}', space=vmem, size = 0x8000, scoped, tag = 'output window, operand 0']
    %10 = vsyncpa [#allocation3], 0
    %s11 = scalar_lea.sflag [#allocation3], 1
    %12 = vsyncpa %s11, 0
    %13 = vsyncpa [#allocation6], 0
    %14 = vsyncpa [#allocation9], 0
    %15 = vsyncpa [#allocation4], 0
    %s16 = scalar_lea.sflag [#allocation4], 1
    %17 = vsyncpa %s16, 0
    loop: start=0, step=1, limit=4
    $region2: #{tpu_custom_call.1} parent=1 // loop_pre_header
      _
    $region3: #{tpu_custom_call.1} parent=1 // loop_header
      %s19 = sphi 0, %s23
      %p20 = scmp.ge.s32.totalorder %s19, 4
      %s26 = sphi 0, %s38
      %s27 = sphi 0, %s34
      %s28 = sphi 0, %s26
      %s29 = sphi 0, %s27
      %s30 = sphi 0, %s28
      %s31 = sphi 0, %s29
      %s43 = sphi 0, %s45
      %s46 = sphi 0, %s43
      %s47 = sphi 0, %s46
      %s63 = sphi 0, %s47
      %s67 = sphi 0, %s67
      %s69 = sphi 0, %s67
      %s70 = sphi 0, %s69
      %s84 = sphi 0, %s70
      %s88 = sphi 0, %s88
      %s90 = sphi 0, %s88
      %s91 = sphi 0, %s90
      %s105 = sphi 0, %s91
      %s109 = sphi 0, %s109
      %s111 = sphi 0, %s109
      %s112 = sphi 0, %s111
      %s126 = sphi 0, %s112
      %s130 = sphi 0, %s130
      %s132 = sphi 0, %s130
      %s133 = sphi 0, %s132
      %s147 = sphi 0, %s133
      %s155 = sphi 0, %s157
      %s158 = sphi 0, %s155
      %s159 = sphi 0, %s158
      %s175 = sphi 0, %s159
    $region4: #{tpu_custom_call.1} parent=1 // loop_header_branch
      %22 = sbr.rel (%p20) target = $region8
    $region5: #{tpu_custom_call.1} parent=1 // loop_body
      %s24 = ssub.s32 %s19, 1
      %s25 = ssub.s32 %s19, 2
      %s32 = sadd.s32 1, %s27
      %p33 = scmp.ge.s32.totalorder %s32, 1
      %s34 = scalar_select %p33, 0, %s32
      %s35 = sadd.s32 1, %s26
      %s36 = scalar_select %p33, %s35, %s26
      %p37 = scmp.ge.s32.totalorder %s36, 2
      %s38 = scalar_select %p37, 0, %s36
      %s39 = ssub.s32 %s26, %s38
      %s40 = ssub.s32 %s27, %s34
      %s41 = sor.u32 %s39, %s40
      %p42 = scmp.eq.s32.totalorder %s41, 0
      %s44 = sadd.s32 %s43, 1
      %s45 = scalar_select %p42, %s43, %s44
      %p48 = pneg %p42
      %p49 = scmp.eq.s32.totalorder %s19, 1
      %p50 = por %p48, %p49
      %p51 = scmp.ne.s32.totalorder %s43, %s46
      %p52 = scmp.eq.s32.totalorder %s19, 0
      %p53 = por %p51, %p52
      %p54 = scmp.ne.s32.totalorder %s43, %s46
      %p55 = scmp.eq.s32.totalorder %s24, 1
      %p56 = por %p54, %p55
      %p57 = scmp.ne.s32.totalorder %s46, %s47
      %p58 = scmp.eq.s32.totalorder %s24, 0
      %p59 = por %p57, %p58
      %p60 = scmp.ne.s32.totalorder %s46, %s47
      %p61 = scmp.eq.s32.totalorder %s25, 1
      %p62 = por %p60, %p61
      %p64 = scmp.ne.s32.totalorder %s47, %s63
      %p65 = scmp.eq.s32.totalorder %s25, 0
      %p66 = por %p64, %p65
      %s68 = sadd.s32 %s67, 1
      %p71 = scmp.eq.s32.totalorder %s19, 1
      %p72 = scmp.ne.s32.totalorder %s67, %s69
      %p73 = scmp.eq.s32.totalorder %s19, 0
      %p74 = por %p72, %p73
      %p75 = scmp.ne.s32.totalorder %s67, %s69
      %p76 = scmp.eq.s32.totalorder %s24, 1
      %p77 = por %p75, %p76
      %p78 = scmp.ne.s32.totalorder %s69, %s70
      %p79 = scmp.eq.s32.totalorder %s24, 0
      %p80 = por %p78, %p79
      %p81 = scmp.ne.s32.totalorder %s69, %s70
      %p82 = scmp.eq.s32.totalorder %s25, 1
      %p83 = por %p81, %p82
      %p85 = scmp.ne.s32.totalorder %s70, %s84
      %p86 = scmp.eq.s32.totalorder %s25, 0
      %p87 = por %p85, %p86
      %s89 = sadd.s32 %s88, 1
      %p92 = scmp.eq.s32.totalorder %s19, 1
      %p93 = scmp.ne.s32.totalorder %s88, %s90
      %p94 = scmp.eq.s32.totalorder %s19, 0
      %p95 = por %p93, %p94
      %p96 = scmp.ne.s32.totalorder %s88, %s90
      %p97 = scmp.eq.s32.totalorder %s24, 1
      %p98 = por %p96, %p97
      %p99 = scmp.ne.s32.totalorder %s90, %s91
      %p100 = scmp.eq.s32.totalorder %s24, 0
      %p101 = por %p99, %p100
      %p102 = scmp.ne.s32.totalorder %s90, %s91
      %p103 = scmp.eq.s32.totalorder %s25, 1
      %p104 = por %p102, %p103
      %p106 = scmp.ne.s32.totalorder %s91, %s105
      %p107 = scmp.eq.s32.totalorder %s25, 0
      %p108 = por %p106, %p107
      %s110 = sadd.s32 %s109, 1
      %p113 = scmp.eq.s32.totalorder %s19, 1
      %p114 = scmp.ne.s32.totalorder %s109, %s111
      %p115 = scmp.eq.s32.totalorder %s19, 0
      %p116 = por %p114, %p115
      %p117 = scmp.ne.s32.totalorder %s109, %s111
      %p118 = scmp.eq.s32.totalorder %s24, 1
      %p119 = por %p117, %p118
      %p120 = scmp.ne.s32.totalorder %s111, %s112
      %p121 = scmp.eq.s32.totalorder %s24, 0
      %p122 = por %p120, %p121
      %p123 = scmp.ne.s32.totalorder %s111, %s112
      %p124 = scmp.eq.s32.totalorder %s25, 1
      %p125 = por %p123, %p124
      %p127 = scmp.ne.s32.totalorder %s112, %s126
      %p128 = scmp.eq.s32.totalorder %s25, 0
      %p129 = por %p127, %p128
      %s131 = sadd.s32 %s130, 1
      %p134 = scmp.eq.s32.totalorder %s19, 1
      %p135 = scmp.ne.s32.totalorder %s130, %s132
      %p136 = scmp.eq.s32.totalorder %s19, 0
      %p137 = por %p135, %p136
      %p138 = scmp.ne.s32.totalorder %s130, %s132
      %p139 = scmp.eq.s32.totalorder %s24, 1
      %p140 = por %p138, %p139
      %p141 = scmp.ne.s32.totalorder %s132, %s133
      %p142 = scmp.eq.s32.totalorder %s24, 0
      %p143 = por %p141, %p142
      %p144 = scmp.ne.s32.totalorder %s132, %s133
      %p145 = scmp.eq.s32.totalorder %s25, 1
      %p146 = por %p144, %p145
      %p148 = scmp.ne.s32.totalorder %s133, %s147
      %p149 = scmp.eq.s32.totalorder %s25, 0
      %p150 = por %p148, %p149
      %s151 = ssub.s32 %s26, %s38
      %s152 = ssub.s32 %s27, %s34
      %s153 = sor.u32 %s151, %s152
      %p154 = scmp.eq.s32.totalorder %s153, 0
      %s156 = sadd.s32 %s155, 1
      %s157 = scalar_select %p154, %s155, %s156
      %p160 = pneg %p154
      %p161 = scmp.eq.s32.totalorder %s19, 1
      %p162 = por %p160, %p161
      %p163 = scmp.ne.s32.totalorder %s155, %s158
      %p164 = scmp.eq.s32.totalorder %s19, 0
      %p165 = por %p163, %p164
      %p166 = scmp.ne.s32.totalorder %s155, %s158
      %p167 = scmp.eq.s32.totalorder %s24, 1
      %p168 = por %p166, %p167
      %p169 = scmp.ne.s32.totalorder %s158, %s159
      %p170 = scmp.eq.s32.totalorder %s24, 0
      %p171 = por %p169, %p170
      %p172 = scmp.ne.s32.totalorder %s158, %s159
      %p173 = scmp.eq.s32.totalorder %s25, 1
      %p174 = por %p172, %p173
      %p176 = scmp.ne.s32.totalorder %s159, %s175
      %p177 = scmp.eq.s32.totalorder %s25, 0
      %p178 = por %p176, %p177
      %p179 = scmp.le.s32.totalorder 1, %s19
      %p180 = scmp.lt.s32.totalorder %s19, 3
      %p181 = pnand %p179, %p180
      %p182 = pneg %p181
      // Predicated region
      $region9: #{tpu_custom_call.1} parent=5 // pred_check
        _
      $region10: #{tpu_custom_call.1} parent=5 // pred_check_branch
        %184 = sbr.rel (%p181) target = $region12
      $region11: #{tpu_custom_call.1} parent=5 // pred_region
        %s185 = ssub.s32 %s19, 1
        // Predicated region
        $region13: #{tpu_custom_call.1} parent=11 // pred_check
          %p186 = pneg %p80
        $region14: #{tpu_custom_call.1} parent=11 // pred_check_branch
          %188 = sbr.rel (%p186) target = $region16
        $region15: #{tpu_custom_call.1} parent=11 // pred_region
          %s190 = ssub.s32 256, 256
          %191 = vsyncadd [#allocation6], %s190
          %s192 = sshll.u32 [#allocation5], 4
          %s193 = int_to_ptr.vmem [resolvable:$true] %s192
          %198 = dma.hbm_to_vmem [thread:$0]  %s1, 256, %s193, [#allocation6], 64, 64, 4
        $region16: #{tpu_custom_call.1} parent=11 // pred_fallthru
          _
        // Predicated region
        $region17: #{tpu_custom_call.1} parent=11 // pred_check
          %p199 = pneg %p101
        $region18: #{tpu_custom_call.1} parent=11 // pred_check_branch
          %201 = sbr.rel (%p199) target = $region20
        $region19: #{tpu_custom_call.1} parent=11 // pred_region
          _
        $region20: #{tpu_custom_call.1} parent=11 // pred_fallthru
          _
        // Predicated region
        $region21: #{tpu_custom_call.1} parent=11 // pred_check
          %p202 = pneg %p122
        $region22: #{tpu_custom_call.1} parent=11 // pred_check_branch
          %204 = sbr.rel (%p202) target = $region24
        $region23: #{tpu_custom_call.1} parent=11 // pred_region
          %s206 = ssub.s32 128, 128
          %207 = vsyncadd [#allocation6], %s206
          %s209 = sshll.u32 [#allocation7], 4
          %s210 = int_to_ptr.vmem [resolvable:$true] %s209
          %212 = dma.hbm_to_vmem [thread:$0]  %s3, 128, %s210, [#allocation6]
        $region24: #{tpu_custom_call.1} parent=11 // pred_fallthru
          _
        // Predicated region
        $region25: #{tpu_custom_call.1} parent=11 // pred_check
          %p213 = pneg %p143
        $region26: #{tpu_custom_call.1} parent=11 // pred_check_branch
          %215 = sbr.rel (%p213) target = $region28
        $region27: #{tpu_custom_call.1} parent=11 // pred_region
          %s217 = ssub.s32 128, 128
          %218 = vsyncadd [#allocation9], %s217
          %s220 = sshll.u32 [#allocation8], 4
          %s221 = int_to_ptr.vmem [resolvable:$true] %s220
          %223 = dma.hbm_to_vmem [thread:$0]  %s4, 128, %s221, [#allocation9]
        $region28: #{tpu_custom_call.1} parent=11 // pred_fallthru
          _
      $region12: #{tpu_custom_call.1} parent=5 // pred_fallthru
        _
      %p224 = scmp.lt.s32.totalorder %s19, 2
      // Predicated region
      $region29: #{tpu_custom_call.1} parent=5 // pred_check
        %p225 = pneg %p224
      $region30: #{tpu_custom_call.1} parent=5 // pred_check_branch
        %227 = sbr.rel (%p225) target = $region32
      $region31: #{tpu_custom_call.1} parent=5 // pred_region
        // Predicated region
        $region33: #{tpu_custom_call.1} parent=31 // pred_check
          %p228 = pneg %p53
        $region34: #{tpu_custom_call.1} parent=31 // pred_check_branch
          %230 = sbr.rel (%p228) target = $region36
        $region35: #{tpu_custom_call.1} parent=31 // pred_region
          %s231 = sand.u32 %s43, 1
          %s232 = scalar_lea.sflag [#allocation3], %s231
          %s233 = sand.u32 %s43, 1
          %s234 = smul.addr %s233, 4
          %s235 = scalar_lea.vmem [#allocation2], %s234
          %s237 = ssub.s32 64, 64
          %238 = vsyncadd %s232, %s237
          %s239 = sadd.s32 %s27, %s26
          %s240 = smul.addr %s239, 64
          %s241 = scalar_lea.hbm %s0, %s240
          %s243 = sshll.u32 %s235, 4
          %s244 = int_to_ptr.vmem [resolvable:$true] %s243
          %246 = dma.hbm_to_vmem [thread:$0]  %s241, 64, %s244, %s232
        $region36: #{tpu_custom_call.1} parent=31 // pred_fallthru
          _
      $region32: #{tpu_custom_call.1} parent=5 // pred_fallthru
        _
      %p247 = scmp.le.s32.totalorder 1, %s19
      %p248 = scmp.lt.s32.totalorder %s19, 3
      %p249 = pnand %p247, %p248
      %p250 = pneg %p249
      // Predicated region
      $region37: #{tpu_custom_call.1} parent=5 // pred_check
        _
      $region38: #{tpu_custom_call.1} parent=5 // pred_check_branch
        %252 = sbr.rel (%p249) target = $region40
      $region39: #{tpu_custom_call.1} parent=5 // pred_region
        %s253 = ssub.s32 %s19, 1
        %s254 = sand.u32 %s46, 1
        %s255 = scalar_lea.sflag [#allocation3], %s254
        %s256 = sand.u32 %s46, 1
        %s257 = smul.addr %s256, 4
        %s258 = scalar_lea.vmem [#allocation2], %s257
        // Predicated region
        $region41: #{tpu_custom_call.1} parent=39 // pred_check
          %p259 = pneg %p59
        $region42: #{tpu_custom_call.1} parent=39 // pred_check_branch
          %261 = sbr.rel (%p259) target = $region44
        $region43: #{tpu_custom_call.1} parent=39 // pred_region
          %262 = dma.done %s255, 64
        $region44: #{tpu_custom_call.1} parent=39 // pred_fallthru
          _
        // Predicated region
        $region45: #{tpu_custom_call.1} parent=39 // pred_check
          %p263 = pneg %p80
        $region46: #{tpu_custom_call.1} parent=39 // pred_check_branch
          %265 = sbr.rel (%p263) target = $region48
        $region47: #{tpu_custom_call.1} parent=39 // pred_region
          %266 = dma.done [#allocation6], 256
        $region48: #{tpu_custom_call.1} parent=39 // pred_fallthru
          _
        // Predicated region
        $region49: #{tpu_custom_call.1} parent=39 // pred_check
          %p267 = pneg %p122
        $region50: #{tpu_custom_call.1} parent=39 // pred_check_branch
          %269 = sbr.rel (%p267) target = $region52
        $region51: #{tpu_custom_call.1} parent=39 // pred_region
          %270 = dma.done [#allocation6], 128
        $region52: #{tpu_custom_call.1} parent=39 // pred_fallthru
          _
        // Predicated region
        $region53: #{tpu_custom_call.1} parent=39 // pred_check
          %p271 = pneg %p143
        $region54: #{tpu_custom_call.1} parent=39 // pred_check_branch
          %273 = sbr.rel (%p271) target = $region56
        $region55: #{tpu_custom_call.1} parent=39 // pred_region
          %274 = dma.done [#allocation9], 128
        $region56: #{tpu_custom_call.1} parent=39 // pred_fallthru
          _
        %s275 = sand.u32 %s46, 1
        %s276 = scalar_lea.sflag [#allocation3], %s275
        %s277 = sand.u32 %s46, 1
        %s278 = smul.addr %s277, 4
        %s279 = scalar_lea.vmem [#allocation2], %s278
        %p280 = pneg %p59
        %p281 = pneg %p56
        %p282 = pneg %p80
        %p283 = pneg %p77
        %p284 = pneg %p101
        %p285 = pneg %p98
        %p286 = pneg %p122
        %p287 = pneg %p119
        %p288 = pneg %p143
        %p289 = pneg %p140
        %p290 = pneg %p171
        %p291 = pneg %p168
        %s292 = sand.u32 %s158, 1
        %s293 = scalar_lea.sflag [#allocation4], %s292
        %s294 = sand.u32 %s158, 1
        %s295 = smul.addr %s294, 32
        %s296 = scalar_lea.vmem [#allocation10], %s295
        %v298 = vld [vmem:[%s258] sm:$0xf]
        %v299 = vld [vmem:[#allocation5] sm:$0xf]
        %v300 = vld [vmem:[#allocation5 + $0x4] sm:$0xf]
        %v301 = vld [vmem:[#allocation5 + $0x8] sm:$0xf]
        %v302 = vld [vmem:[#allocation5 + $0xc] sm:$0xf]
        %v303 = vld [vmem:[%s2] sm:$0x1]
        %v305 = vlaneseq
        %v306 = vshrl.u32 %v305, 7
        %v307 = vsub.s32 0, %v306
        %v308 = vrot.slane %v303, %v307
        %v314 = vunpack.c.l.b16 %v299
        %v315 = vunpack.c.l.b16 %v300
        %v316 = vunpack.c.l.b16 %v301
        %v317 = vunpack.c.l.b16 %v302
        %v318 = vpack.c.b16 %v315, %v314
        %v319 = vpack.c.b16 %v317, %v316
        %vm322 = vcmask 261120
        %v324 = vsel %vm322, %v298, 0
        %326 = vmatprep.subr.bf16.mxu0 0
        %327 = vmatpush1.bf16.msra.mxu0 0
        %328 = vmatprep.subr.bf16.mxu0 0
        %329 = vmatpush1.bf16.msra.mxu0 0
        %330 = vmatprep.subr.bf16.mxu0 0
        %331 = vmatpush1.bf16.msra.mxu0 0
        %332 = vmatprep.subr.bf16.mxu0 0
        %333 = vmatpush1.bf16.msra.mxu0 0
        %334 = vmatprep.subr.bf16.mxu0 0
        %335 = vmatpush1.bf16.msra.mxu0 0
        %336 = vmatprep.subr.bf16.mxu0 0
        %337 = vmatpush1.bf16.msra.mxu0 0
        %338 = vmatprep.subr.bf16.mxu0 0
        %339 = vmatpush1.bf16.msra.mxu0 %v319
        %340 = vmatprep.subr.bf16.mxu0 0
        %341 = vmatpush1.bf16.msra.mxu0 %v318
        %342 = vmatprep.subr.bf16.mxu0 0
        %343 = vmatpush2.bf16.msra.mxu0 0
        %344 = vmatprep.subr.bf16.mxu0 0
        %345 = vmatpush2.bf16.msra.mxu0 0
        %346 = vmatprep.subr.bf16.mxu0 0
        %347 = vmatpush2.bf16.msra.mxu0 0
        %348 = vmatprep.subr.bf16.mxu0 0
        %349 = vmatpush2.bf16.msra.mxu0 0
        %350 = vmatprep.subr.bf16.mxu0 0
        %351 = vmatpush2.bf16.msra.mxu0 0
        %352 = vmatprep.subr.bf16.mxu0 0
        %353 = vmatpush2.bf16.msra.mxu0 0
        %354 = vmatprep.subr.bf16.mxu0 0
        %355 = vmatpush2.bf16.msra.mxu0 0
        %356 = vmatprep.subr.bf16.mxu0 0
        %357 = vmatpush2.bf16.msra.mxu0 0
        %358 = vmatprep.mubr.bf16.mxu0 0
        %359 = vmatmul.mubr.bf16.gmra.mxu0 %v324
        %v360 = vpop.f32.mrf.mxu0
        %v361 = vadd.f32 %v308, %v360
        %v362 = vpop.f32.mrf.mxu0
        %v363 = vpop.f32.mrf.mxu0
        %v364 = vpop.f32.mrf.mxu0
        %365 = vdwg.mxu0
        %v366 = vld [vmem:[#allocation7] sm:$0xff]
        %vm367 = vcmask 64512
        %v369 = vsel %vm367, %v361, 0
        %371 = vmatprep.subr.mxu0 0.0
        %372 = vmatpush1.msra.mxu0 0.0
        %373 = vmatprep.subr.mxu0 0.0
        %374 = vmatpush1.msra.mxu0 0.0
        %375 = vmatprep.subr.mxu0 0.0
        %376 = vmatpush1.msra.mxu0 0.0
        %377 = vmatprep.subr.mxu0 0.0
        %378 = vmatpush1.msra.mxu0 0.0
        %379 = vmatprep.subr.mxu0 0.0
        %380 = vmatpush1.msra.mxu0 0.0
        %381 = vmatprep.subr.mxu0 0.0
        %382 = vmatpush1.msra.mxu0 0.0
        %383 = vmatprep.subr.mxu0 0.0
        %384 = vmatpush1.msra.mxu0 0.0
        %385 = vmatprep.subr.mxu0 0.0
        %386 = vmatpush1.msra.mxu0 0.0
        %387 = vmatprep.subr.mxu0 0.0
        %388 = vmatpush1.msra.mxu0 0.0
        %389 = vmatprep.subr.mxu0 0.0
        %390 = vmatpush1.msra.mxu0 0.0
        %391 = vmatprep.subr.mxu0 0.0
        %392 = vmatpush1.msra.mxu0 0.0
        %393 = vmatprep.subr.mxu0 0.0
        %394 = vmatpush1.msra.mxu0 0.0
        %395 = vmatprep.subr.mxu0 0.0
        %396 = vmatpush1.msra.mxu0 0.0
        %397 = vmatprep.subr.mxu0 0.0
        %398 = vmatpush1.msra.mxu0 0.0
        %399 = vmatprep.subr.mxu0 0.0
        %400 = vmatpush1.msra.mxu0 0.0
        %401 = vmatprep.subr.mxu0 0.0
        %402 = vmatpush1.msra.mxu0 %v366
        %403 = vmatprep.subr.mxu0 0.0
        %404 = vmatpush2.msra.mxu0 0.0
        %405 = vmatprep.subr.mxu0 0.0
        %406 = vmatpush2.msra.mxu0 0.0
        %407 = vmatprep.subr.mxu0 0.0
        %408 = vmatpush2.msra.mxu0 0.0
        %409 = vmatprep.subr.mxu0 0.0
        %410 = vmatpush2.msra.mxu0 0.0
        %411 = vmatprep.subr.mxu0 0.0
        %412 = vmatpush2.msra.mxu0 0.0
        %413 = vmatprep.subr.mxu0 0.0
        %414 = vmatpush2.msra.mxu0 0.0
        %415 = vmatprep.subr.mxu0 0.0
        %416 = vmatpush2.msra.mxu0 0.0
        %417 = vmatprep.subr.mxu0 0.0
        %418 = vmatpush2.msra.mxu0 0.0
        %419 = vmatprep.subr.mxu0 0.0
        %420 = vmatpush2.msra.mxu0 0.0
        %421 = vmatprep.subr.mxu0 0.0
        %422 = vmatpush2.msra.mxu0 0.0
        %423 = vmatprep.subr.mxu0 0.0
        %424 = vmatpush2.msra.mxu0 0.0
        %425 = vmatprep.subr.mxu0 0.0
        %426 = vmatpush2.msra.mxu0 0.0
        %427 = vmatprep.subr.mxu0 0.0
        %428 = vmatpush2.msra.mxu0 0.0
        %429 = vmatprep.subr.mxu0 0.0
        %430 = vmatpush2.msra.mxu0 0.0
        %431 = vmatprep.subr.mxu0 0.0
        %432 = vmatpush2.msra.mxu0 0.0
        %433 = vmatprep.subr.mxu0 0.0
        %434 = vmatpush2.msra.mxu0 0.0
        %435 = vmatprep.mubr.f32.mxu0 0.0
        %436 = vmatmul.mubr.f32.gmra.mxu0 %v369
        %v437 = vpop.f32.mrf.mxu0
        %v438 = vadd.f32 0.0, %v437
        %v439 = vpop.f32.mrf.mxu0
        %440 = vdwg.mxu0
        %v441 = vld [vmem:[#allocation8] sm:$0xff]
        %442 = vmatprep.subr.mxu0 0.0
        %443 = vmatpush1.msra.mxu0 0.0
        %444 = vmatprep.subr.mxu0 0.0
        %445 = vmatpush1.msra.mxu0 0.0
        %446 = vmatprep.subr.mxu0 0.0
        %447 = vmatpush1.msra.mxu0 0.0
        %448 = vmatprep.subr.mxu0 0.0
        %449 = vmatpush1.msra.mxu0 0.0
        %450 = vmatprep.subr.mxu0 0.0
        %451 = vmatpush1.msra.mxu0 0.0
        %452 = vmatprep.subr.mxu0 0.0
        %453 = vmatpush1.msra.mxu0 0.0
        %454 = vmatprep.subr.mxu0 0.0
        %455 = vmatpush1.msra.mxu0 0.0
        %456 = vmatprep.subr.mxu0 0.0
        %457 = vmatpush1.msra.mxu0 0.0
        %458 = vmatprep.subr.mxu0 0.0
        %459 = vmatpush1.msra.mxu0 0.0
        %460 = vmatprep.subr.mxu0 0.0
        %461 = vmatpush1.msra.mxu0 0.0
        %462 = vmatprep.subr.mxu0 0.0
        %463 = vmatpush1.msra.mxu0 0.0
        %464 = vmatprep.subr.mxu0 0.0
        %465 = vmatpush1.msra.mxu0 0.0
        %466 = vmatprep.subr.mxu0 0.0
        %467 = vmatpush1.msra.mxu0 0.0
        %468 = vmatprep.subr.mxu0 0.0
        %469 = vmatpush1.msra.mxu0 0.0
        %470 = vmatprep.subr.mxu0 0.0
        %471 = vmatpush1.msra.mxu0 0.0
        %472 = vmatprep.subr.mxu0 0.0
        %473 = vmatpush1.msra.mxu0 %v441
        %474 = vmatprep.subr.mxu0 0.0
        %475 = vmatpush2.msra.mxu0 0.0
        %476 = vmatprep.subr.mxu0 0.0
        %477 = vmatpush2.msra.mxu0 0.0
        %478 = vmatprep.subr.mxu0 0.0
        %479 = vmatpush2.msra.mxu0 0.0
        %480 = vmatprep.subr.mxu0 0.0
        %481 = vmatpush2.msra.mxu0 0.0
        %482 = vmatprep.subr.mxu0 0.0
        %483 = vmatpush2.msra.mxu0 0.0
        %484 = vmatprep.subr.mxu0 0.0
        %485 = vmatpush2.msra.mxu0 0.0
        %486 = vmatprep.subr.mxu0 0.0
        %487 = vmatpush2.msra.mxu0 0.0
        %488 = vmatprep.subr.mxu0 0.0
        %489 = vmatpush2.msra.mxu0 0.0
        %490 = vmatprep.subr.mxu0 0.0
        %491 = vmatpush2.msra.mxu0 0.0
        %492 = vmatprep.subr.mxu0 0.0
        %493 = vmatpush2.msra.mxu0 0.0
        %494 = vmatprep.subr.mxu0 0.0
        %495 = vmatpush2.msra.mxu0 0.0
        %496 = vmatprep.subr.mxu0 0.0
        %497 = vmatpush2.msra.mxu0 0.0
        %498 = vmatprep.subr.mxu0 0.0
        %499 = vmatpush2.msra.mxu0 0.0
        %500 = vmatprep.subr.mxu0 0.0
        %501 = vmatpush2.msra.mxu0 0.0
        %502 = vmatprep.subr.mxu0 0.0
        %503 = vmatpush2.msra.mxu0 0.0
        %504 = vmatprep.subr.mxu0 0.0
        %505 = vmatpush2.msra.mxu0 0.0
        %506 = vmatprep.mubr.f32.mxu0 0.0
        %507 = vmatmul.mubr.f32.gmra.mxu0 %v369
        %v508 = vpop.f32.mrf.mxu0
        %v509 = vadd.f32 0.0, %v508
        %v510 = vpop.f32.mrf.mxu0
        %511 = vdwg.mxu0
        %v512 = vmul.f32 %v438, %v509
        %vm513 = vcmask 130048
        %514 = vst.msk [vmem:[%s296] sm:$0xff] %vm513, %v512
        %v515 = vld [vmem:[#allocation7] sm:$0xff]
        %516 = vrot.lane.b32.xlu0 %v361, 120
        %v517 = vpop.permute.xlu0 %516
        %v518 = vsel %vm367, %v517, 0
        %520 = vmatprep.subr.mxu0 0.0
        %521 = vmatpush1.msra.mxu0 0.0
        %522 = vmatprep.subr.mxu0 0.0
        %523 = vmatpush1.msra.mxu0 0.0
        %524 = vmatprep.subr.mxu0 0.0
        %525 = vmatpush1.msra.mxu0 0.0
        %526 = vmatprep.subr.mxu0 0.0
        %527 = vmatpush1.msra.mxu0 0.0
        %528 = vmatprep.subr.mxu0 0.0
        %529 = vmatpush1.msra.mxu0 0.0
        %530 = vmatprep.subr.mxu0 0.0
        %531 = vmatpush1.msra.mxu0 0.0
        %532 = vmatprep.subr.mxu0 0.0
        %533 = vmatpush1.msra.mxu0 0.0
        %534 = vmatprep.subr.mxu0 0.0
        %535 = vmatpush1.msra.mxu0 0.0
        %536 = vmatprep.subr.mxu0 0.0
        %537 = vmatpush1.msra.mxu0 0.0
        %538 = vmatprep.subr.mxu0 0.0
        %539 = vmatpush1.msra.mxu0 0.0
        %540 = vmatprep.subr.mxu0 0.0
        %541 = vmatpush1.msra.mxu0 0.0
        %542 = vmatprep.subr.mxu0 0.0
        %543 = vmatpush1.msra.mxu0 0.0
        %544 = vmatprep.subr.mxu0 0.0
        %545 = vmatpush1.msra.mxu0 0.0
        %546 = vmatprep.subr.mxu0 0.0
        %547 = vmatpush1.msra.mxu0 0.0
        %548 = vmatprep.subr.mxu0 0.0
        %549 = vmatpush1.msra.mxu0 0.0
        %550 = vmatprep.subr.mxu0 0.0
        %551 = vmatpush1.msra.mxu0 %v515
        %552 = vmatprep.subr.mxu0 0.0
        %553 = vmatpush2.msra.mxu0 0.0
        %554 = vmatprep.subr.mxu0 0.0
        %555 = vmatpush2.msra.mxu0 0.0
        %556 = vmatprep.subr.mxu0 0.0
        %557 = vmatpush2.msra.mxu0 0.0
        %558 = vmatprep.subr.mxu0 0.0
        %559 = vmatpush2.msra.mxu0 0.0
        %560 = vmatprep.subr.mxu0 0.0
        %561 = vmatpush2.msra.mxu0 0.0
        %562 = vmatprep.subr.mxu0 0.0
        %563 = vmatpush2.msra.mxu0 0.0
        %564 = vmatprep.subr.mxu0 0.0
        %565 = vmatpush2.msra.mxu0 0.0
        %566 = vmatprep.subr.mxu0 0.0
        %567 = vmatpush2.msra.mxu0 0.0
        %568 = vmatprep.subr.mxu0 0.0
        %569 = vmatpush2.msra.mxu0 0.0
        %570 = vmatprep.subr.mxu0 0.0
        %571 = vmatpush2.msra.mxu0 0.0
        %572 = vmatprep.subr.mxu0 0.0
        %573 = vmatpush2.msra.mxu0 0.0
        %574 = vmatprep.subr.mxu0 0.0
        %575 = vmatpush2.msra.mxu0 0.0
        %576 = vmatprep.subr.mxu0 0.0
        %577 = vmatpush2.msra.mxu0 0.0
        %578 = vmatprep.subr.mxu0 0.0
        %579 = vmatpush2.msra.mxu0 0.0
        %580 = vmatprep.subr.mxu0 0.0
        %581 = vmatpush2.msra.mxu0 0.0
        %582 = vmatprep.subr.mxu0 0.0
        %583 = vmatpush2.msra.mxu0 0.0
        %584 = vmatprep.mubr.f32.mxu0 0.0
        %585 = vmatmul.mubr.f32.gmra.mxu0 %v518
        %v586 = vpop.f32.mrf.mxu0
        %v587 = vadd.f32 0.0, %v586
        %v588 = vpop.f32.mrf.mxu0
        %589 = vdwg.mxu0
        %v590 = vld [vmem:[#allocation8] sm:$0xff]
        %591 = vmatprep.subr.mxu0 0.0
        %592 = vmatpush1.msra.mxu0 0.0
        %593 = vmatprep.subr.mxu0 0.0
        %594 = vmatpush1.msra.mxu0 0.0
        %595 = vmatprep.subr.mxu0 0.0
        %596 = vmatpush1.msra.mxu0 0.0
        %597 = vmatprep.subr.mxu0 0.0
        %598 = vmatpush1.msra.mxu0 0.0
        %599 = vmatprep.subr.mxu0 0.0
        %600 = vmatpush1.msra.mxu0 0.0
        %601 = vmatprep.subr.mxu0 0.0
        %602 = vmatpush1.msra.mxu0 0.0
        %603 = vmatprep.subr.mxu0 0.0
        %604 = vmatpush1.msra.mxu0 0.0
        %605 = vmatprep.subr.mxu0 0.0
        %606 = vmatpush1.msra.mxu0 0.0
        %607 = vmatprep.subr.mxu0 0.0
        %608 = vmatpush1.msra.mxu0 0.0
        %609 = vmatprep.subr.mxu0 0.0
        %610 = vmatpush1.msra.mxu0 0.0
        %611 = vmatprep.subr.mxu0 0.0
        %612 = vmatpush1.msra.mxu0 0.0
        %613 = vmatprep.subr.mxu0 0.0
        %614 = vmatpush1.msra.mxu0 0.0
        %615 = vmatprep.subr.mxu0 0.0
        %616 = vmatpush1.msra.mxu0 0.0
        %617 = vmatprep.subr.mxu0 0.0
        %618 = vmatpush1.msra.mxu0 0.0
        %619 = vmatprep.subr.mxu0 0.0
        %620 = vmatpush1.msra.mxu0 0.0
        %621 = vmatprep.subr.mxu0 0.0
        %622 = vmatpush1.msra.mxu0 %v590
        %623 = vmatprep.subr.mxu0 0.0
        %624 = vmatpush2.msra.mxu0 0.0
        %625 = vmatprep.subr.mxu0 0.0
        %626 = vmatpush2.msra.mxu0 0.0
        %627 = vmatprep.subr.mxu0 0.0
        %628 = vmatpush2.msra.mxu0 0.0
        %629 = vmatprep.subr.mxu0 0.0
        %630 = vmatpush2.msra.mxu0 0.0
        %631 = vmatprep.subr.mxu0 0.0
        %632 = vmatpush2.msra.mxu0 0.0
        %633 = vmatprep.subr.mxu0 0.0
        %634 = vmatpush2.msra.mxu0 0.0
        %635 = vmatprep.subr.mxu0 0.0
        %636 = vmatpush2.msra.mxu0 0.0
        %637 = vmatprep.subr.mxu0 0.0
        %638 = vmatpush2.msra.mxu0 0.0
        %639 = vmatprep.subr.mxu0 0.0
        %640 = vmatpush2.msra.mxu0 0.0
        %641 = vmatprep.subr.mxu0 0.0
        %642 = vmatpush2.msra.mxu0 0.0
        %643 = vmatprep.subr.mxu0 0.0
        %644 = vmatpush2.msra.mxu0 0.0
        %645 = vmatprep.subr.mxu0 0.0
        %646 = vmatpush2.msra.mxu0 0.0
        %647 = vmatprep.subr.mxu0 0.0
        %648 = vmatpush2.msra.mxu0 0.0
        %649 = vmatprep.subr.mxu0 0.0
        %650 = vmatpush2.msra.mxu0 0.0
        %651 = vmatprep.subr.mxu0 0.0
        %652 = vmatpush2.msra.mxu0 0.0
        %653 = vmatprep.subr.mxu0 0.0
        %654 = vmatpush2.msra.mxu0 0.0
        %655 = vmatprep.mubr.f32.mxu0 0.0
        %656 = vmatmul.mubr.f32.gmra.mxu0 %v518
        %v657 = vpop.f32.mrf.mxu0
        %v658 = vadd.f32 0.0, %v657
        %v659 = vpop.f32.mrf.mxu0
        %660 = vdwg.mxu0
        %v661 = vmul.f32 %v587, %v658
        %s662 = scalar_lea.vmem %s296, 8 [#allocation10]
        %663 = vst.msk [vmem:[%s662] sm:$0xff] %vm513, %v661
        %v664 = vld [vmem:[#allocation7] sm:$0xff]
        %665 = vrot.lane.b32.xlu0 %v361, 112
        %v666 = vpop.permute.xlu0 %665
        %v667 = vsel %vm367, %v666, 0
        %669 = vmatprep.subr.mxu0 0.0
        %670 = vmatpush1.msra.mxu0 0.0
        %671 = vmatprep.subr.mxu0 0.0
        %672 = vmatpush1.msra.mxu0 0.0
        %673 = vmatprep.subr.mxu0 0.0
        %674 = vmatpush1.msra.mxu0 0.0
        %675 = vmatprep.subr.mxu0 0.0
        %676 = vmatpush1.msra.mxu0 0.0
        %677 = vmatprep.subr.mxu0 0.0
        %678 = vmatpush1.msra.mxu0 0.0
        %679 = vmatprep.subr.mxu0 0.0
        %680 = vmatpush1.msra.mxu0 0.0
        %681 = vmatprep.subr.mxu0 0.0
        %682 = vmatpush1.msra.mxu0 0.0
        %683 = vmatprep.subr.mxu0 0.0
        %684 = vmatpush1.msra.mxu0 0.0
        %685 = vmatprep.subr.mxu0 0.0
        %686 = vmatpush1.msra.mxu0 0.0
        %687 = vmatprep.subr.mxu0 0.0
        %688 = vmatpush1.msra.mxu0 0.0
        %689 = vmatprep.subr.mxu0 0.0
        %690 = vmatpush1.msra.mxu0 0.0
        %691 = vmatprep.subr.mxu0 0.0
        %692 = vmatpush1.msra.mxu0 0.0
        %693 = vmatprep.subr.mxu0 0.0
        %694 = vmatpush1.msra.mxu0 0.0
        %695 = vmatprep.subr.mxu0 0.0
        %696 = vmatpush1.msra.mxu0 0.0
        %697 = vmatprep.subr.mxu0 0.0
        %698 = vmatpush1.msra.mxu0 0.0
        %699 = vmatprep.subr.mxu0 0.0
        %700 = vmatpush1.msra.mxu0 %v664
        %701 = vmatprep.subr.mxu0 0.0
        %702 = vmatpush2.msra.mxu0 0.0
        %703 = vmatprep.subr.mxu0 0.0
        %704 = vmatpush2.msra.mxu0 0.0
        %705 = vmatprep.subr.mxu0 0.0
        %706 = vmatpush2.msra.mxu0 0.0
        %707 = vmatprep.subr.mxu0 0.0
        %708 = vmatpush2.msra.mxu0 0.0
        %709 = vmatprep.subr.mxu0 0.0
        %710 = vmatpush2.msra.mxu0 0.0
        %711 = vmatprep.subr.mxu0 0.0
        %712 = vmatpush2.msra.mxu0 0.0
        %713 = vmatprep.subr.mxu0 0.0
        %714 = vmatpush2.msra.mxu0 0.0
        %715 = vmatprep.subr.mxu0 0.0
        %716 = vmatpush2.msra.mxu0 0.0
        %717 = vmatprep.subr.mxu0 0.0
        %718 = vmatpush2.msra.mxu0 0.0
        %719 = vmatprep.subr.mxu0 0.0
        %720 = vmatpush2.msra.mxu0 0.0
        %721 = vmatprep.subr.mxu0 0.0
        %722 = vmatpush2.msra.mxu0 0.0
        %723 = vmatprep.subr.mxu0 0.0
        %724 = vmatpush2.msra.mxu0 0.0
        %725 = vmatprep.subr.mxu0 0.0
        %726 = vmatpush2.msra.mxu0 0.0
        %727 = vmatprep.subr.mxu0 0.0
        %728 = vmatpush2.msra.mxu0 0.0
        %729 = vmatprep.subr.mxu0 0.0
        %730 = vmatpush2.msra.mxu0 0.0
        %731 = vmatprep.subr.mxu0 0.0
        %732 = vmatpush2.msra.mxu0 0.0
        %733 = vmatprep.mubr.f32.mxu0 0.0
        %734 = vmatmul.mubr.f32.gmra.mxu0 %v667
        %v735 = vpop.f32.mrf.mxu0
        %v736 = vadd.f32 0.0, %v735
        %v737 = vpop.f32.mrf.mxu0
        %738 = vdwg.mxu0
        %v739 = vld [vmem:[#allocation8] sm:$0xff]
        %740 = vmatprep.subr.mxu0 0.0
        %741 = vmatpush1.msra.mxu0 0.0
        %742 = vmatprep.subr.mxu0 0.0
        %743 = vmatpush1.msra.mxu0 0.0
        %744 = vmatprep.subr.mxu0 0.0
        %745 = vmatpush1.msra.mxu0 0.0
        %746 = vmatprep.subr.mxu0 0.0
        %747 = vmatpush1.msra.mxu0 0.0
        %748 = vmatprep.subr.mxu0 0.0
        %749 = vmatpush1.msra.mxu0 0.0
        %750 = vmatprep.subr.mxu0 0.0
        %751 = vmatpush1.msra.mxu0 0.0
        %752 = vmatprep.subr.mxu0 0.0
        %753 = vmatpush1.msra.mxu0 0.0
        %754 = vmatprep.subr.mxu0 0.0
        %755 = vmatpush1.msra.mxu0 0.0
        %756 = vmatprep.subr.mxu0 0.0
        %757 = vmatpush1.msra.mxu0 0.0
        %758 = vmatprep.subr.mxu0 0.0
        %759 = vmatpush1.msra.mxu0 0.0
        %760 = vmatprep.subr.mxu0 0.0
        %761 = vmatpush1.msra.mxu0 0.0
        %762 = vmatprep.subr.mxu0 0.0
        %763 = vmatpush1.msra.mxu0 0.0
        %764 = vmatprep.subr.mxu0 0.0
        %765 = vmatpush1.msra.mxu0 0.0
        %766 = vmatprep.subr.mxu0 0.0
        %767 = vmatpush1.msra.mxu0 0.0
        %768 = vmatprep.subr.mxu0 0.0
        %769 = vmatpush1.msra.mxu0 0.0
        %770 = vmatprep.subr.mxu0 0.0
        %771 = vmatpush1.msra.mxu0 %v739
        %772 = vmatprep.subr.mxu0 0.0
        %773 = vmatpush2.msra.mxu0 0.0
        %774 = vmatprep.subr.mxu0 0.0
        %775 = vmatpush2.msra.mxu0 0.0
        %776 = vmatprep.subr.mxu0 0.0
        %777 = vmatpush2.msra.mxu0 0.0
        %778 = vmatprep.subr.mxu0 0.0
        %779 = vmatpush2.msra.mxu0 0.0
        %780 = vmatprep.subr.mxu0 0.0
        %781 = vmatpush2.msra.mxu0 0.0
        %782 = vmatprep.subr.mxu0 0.0
        %783 = vmatpush2.msra.mxu0 0.0
        %784 = vmatprep.subr.mxu0 0.0
        %785 = vmatpush2.msra.mxu0 0.0
        %786 = vmatprep.subr.mxu0 0.0
        %787 = vmatpush2.msra.mxu0 0.0
        %788 = vmatprep.subr.mxu0 0.0
        %789 = vmatpush2.msra.mxu0 0.0
        %790 = vmatprep.subr.mxu0 0.0
        %791 = vmatpush2.msra.mxu0 0.0
        %792 = vmatprep.subr.mxu0 0.0
        %793 = vmatpush2.msra.mxu0 0.0
        %794 = vmatprep.subr.mxu0 0.0
        %795 = vmatpush2.msra.mxu0 0.0
        %796 = vmatprep.subr.mxu0 0.0
        %797 = vmatpush2.msra.mxu0 0.0
        %798 = vmatprep.subr.mxu0 0.0
        %799 = vmatpush2.msra.mxu0 0.0
        %800 = vmatprep.subr.mxu0 0.0
        %801 = vmatpush2.msra.mxu0 0.0
        %802 = vmatprep.subr.mxu0 0.0
        %803 = vmatpush2.msra.mxu0 0.0
        %804 = vmatprep.mubr.f32.mxu0 0.0
        %805 = vmatmul.mubr.f32.gmra.mxu0 %v667
        %v806 = vpop.f32.mrf.mxu0
        %v807 = vadd.f32 0.0, %v806
        %v808 = vpop.f32.mrf.mxu0
        %809 = vdwg.mxu0
        %v810 = vmul.f32 %v736, %v807
        %s811 = scalar_lea.vmem %s296, 16 [#allocation10]
        %812 = vst.msk [vmem:[%s811] sm:$0xff] %vm513, %v810
        %v813 = vld [vmem:[#allocation7] sm:$0xff]
        %814 = vrot.lane.b32.xlu0 %v361, 104
        %v815 = vpop.permute.xlu0 %814
        %v816 = vsel %vm367, %v815, 0
        %818 = vmatprep.subr.mxu0 0.0
        %819 = vmatpush1.msra.mxu0 0.0
        %820 = vmatprep.subr.mxu0 0.0
        %821 = vmatpush1.msra.mxu0 0.0
        %822 = vmatprep.subr.mxu0 0.0
        %823 = vmatpush1.msra.mxu0 0.0
        %824 = vmatprep.subr.mxu0 0.0
        %825 = vmatpush1.msra.mxu0 0.0
        %826 = vmatprep.subr.mxu0 0.0
        %827 = vmatpush1.msra.mxu0 0.0
        %828 = vmatprep.subr.mxu0 0.0
        %829 = vmatpush1.msra.mxu0 0.0
        %830 = vmatprep.subr.mxu0 0.0
        %831 = vmatpush1.msra.mxu0 0.0
        %832 = vmatprep.subr.mxu0 0.0
        %833 = vmatpush1.msra.mxu0 0.0
        %834 = vmatprep.subr.mxu0 0.0
        %835 = vmatpush1.msra.mxu0 0.0
        %836 = vmatprep.subr.mxu0 0.0
        %837 = vmatpush1.msra.mxu0 0.0
        %838 = vmatprep.subr.mxu0 0.0
        %839 = vmatpush1.msra.mxu0 0.0
        %840 = vmatprep.subr.mxu0 0.0
        %841 = vmatpush1.msra.mxu0 0.0
        %842 = vmatprep.subr.mxu0 0.0
        %843 = vmatpush1.msra.mxu0 0.0
        %844 = vmatprep.subr.mxu0 0.0
        %845 = vmatpush1.msra.mxu0 0.0
        %846 = vmatprep.subr.mxu0 0.0
        %847 = vmatpush1.msra.mxu0 0.0
        %848 = vmatprep.subr.mxu0 0.0
        %849 = vmatpush1.msra.mxu0 %v813
        %850 = vmatprep.subr.mxu0 0.0
        %851 = vmatpush2.msra.mxu0 0.0
        %852 = vmatprep.subr.mxu0 0.0
        %853 = vmatpush2.msra.mxu0 0.0
        %854 = vmatprep.subr.mxu0 0.0
        %855 = vmatpush2.msra.mxu0 0.0
        %856 = vmatprep.subr.mxu0 0.0
        %857 = vmatpush2.msra.mxu0 0.0
        %858 = vmatprep.subr.mxu0 0.0
        %859 = vmatpush2.msra.mxu0 0.0
        %860 = vmatprep.subr.mxu0 0.0
        %861 = vmatpush2.msra.mxu0 0.0
        %862 = vmatprep.subr.mxu0 0.0
        %863 = vmatpush2.msra.mxu0 0.0
        %864 = vmatprep.subr.mxu0 0.0
        %865 = vmatpush2.msra.mxu0 0.0
        %866 = vmatprep.subr.mxu0 0.0
        %867 = vmatpush2.msra.mxu0 0.0
        %868 = vmatprep.subr.mxu0 0.0
        %869 = vmatpush2.msra.mxu0 0.0
        %870 = vmatprep.subr.mxu0 0.0
        %871 = vmatpush2.msra.mxu0 0.0
        %872 = vmatprep.subr.mxu0 0.0
        %873 = vmatpush2.msra.mxu0 0.0
        %874 = vmatprep.subr.mxu0 0.0
        %875 = vmatpush2.msra.mxu0 0.0
        %876 = vmatprep.subr.mxu0 0.0
        %877 = vmatpush2.msra.mxu0 0.0
        %878 = vmatprep.subr.mxu0 0.0
        %879 = vmatpush2.msra.mxu0 0.0
        %880 = vmatprep.subr.mxu0 0.0
        %881 = vmatpush2.msra.mxu0 0.0
        %882 = vmatprep.mubr.f32.mxu0 0.0
        %883 = vmatmul.mubr.f32.gmra.mxu0 %v816
        %v884 = vpop.f32.mrf.mxu0
        %v885 = vadd.f32 0.0, %v884
        %v886 = vpop.f32.mrf.mxu0
        %887 = vdwg.mxu0
        %v888 = vld [vmem:[#allocation8] sm:$0xff]
        %889 = vmatprep.subr.mxu0 0.0
        %890 = vmatpush1.msra.mxu0 0.0
        %891 = vmatprep.subr.mxu0 0.0
        %892 = vmatpush1.msra.mxu0 0.0
        %893 = vmatprep.subr.mxu0 0.0
        %894 = vmatpush1.msra.mxu0 0.0
        %895 = vmatprep.subr.mxu0 0.0
        %896 = vmatpush1.msra.mxu0 0.0
        %897 = vmatprep.subr.mxu0 0.0
        %898 = vmatpush1.msra.mxu0 0.0
        %899 = vmatprep.subr.mxu0 0.0
        %900 = vmatpush1.msra.mxu0 0.0
        %901 = vmatprep.subr.mxu0 0.0
        %902 = vmatpush1.msra.mxu0 0.0
        %903 = vmatprep.subr.mxu0 0.0
        %904 = vmatpush1.msra.mxu0 0.0
        %905 = vmatprep.subr.mxu0 0.0
        %906 = vmatpush1.msra.mxu0 0.0
        %907 = vmatprep.subr.mxu0 0.0
        %908 = vmatpush1.msra.mxu0 0.0
        %909 = vmatprep.subr.mxu0 0.0
        %910 = vmatpush1.msra.mxu0 0.0
        %911 = vmatprep.subr.mxu0 0.0
        %912 = vmatpush1.msra.mxu0 0.0
        %913 = vmatprep.subr.mxu0 0.0
        %914 = vmatpush1.msra.mxu0 0.0
        %915 = vmatprep.subr.mxu0 0.0
        %916 = vmatpush1.msra.mxu0 0.0
        %917 = vmatprep.subr.mxu0 0.0
        %918 = vmatpush1.msra.mxu0 0.0
        %919 = vmatprep.subr.mxu0 0.0
        %920 = vmatpush1.msra.mxu0 %v888
        %921 = vmatprep.subr.mxu0 0.0
        %922 = vmatpush2.msra.mxu0 0.0
        %923 = vmatprep.subr.mxu0 0.0
        %924 = vmatpush2.msra.mxu0 0.0
        %925 = vmatprep.subr.mxu0 0.0
        %926 = vmatpush2.msra.mxu0 0.0
        %927 = vmatprep.subr.mxu0 0.0
        %928 = vmatpush2.msra.mxu0 0.0
        %929 = vmatprep.subr.mxu0 0.0
        %930 = vmatpush2.msra.mxu0 0.0
        %931 = vmatprep.subr.mxu0 0.0
        %932 = vmatpush2.msra.mxu0 0.0
        %933 = vmatprep.subr.mxu0 0.0
        %934 = vmatpush2.msra.mxu0 0.0
        %935 = vmatprep.subr.mxu0 0.0
        %936 = vmatpush2.msra.mxu0 0.0
        %937 = vmatprep.subr.mxu0 0.0
        %938 = vmatpush2.msra.mxu0 0.0
        %939 = vmatprep.subr.mxu0 0.0
        %940 = vmatpush2.msra.mxu0 0.0
        %941 = vmatprep.subr.mxu0 0.0
        %942 = vmatpush2.msra.mxu0 0.0
        %943 = vmatprep.subr.mxu0 0.0
        %944 = vmatpush2.msra.mxu0 0.0
        %945 = vmatprep.subr.mxu0 0.0
        %946 = vmatpush2.msra.mxu0 0.0
        %947 = vmatprep.subr.mxu0 0.0
        %948 = vmatpush2.msra.mxu0 0.0
        %949 = vmatprep.subr.mxu0 0.0
        %950 = vmatpush2.msra.mxu0 0.0
        %951 = vmatprep.subr.mxu0 0.0
        %952 = vmatpush2.msra.mxu0 0.0
        %953 = vmatprep.mubr.f32.mxu0 0.0
        %954 = vmatmul.mubr.f32.gmra.mxu0 %v816
        %v955 = vpop.f32.mrf.mxu0
        %v956 = vadd.f32 0.0, %v955
        %v957 = vpop.f32.mrf.mxu0
        %958 = vdwg.mxu0
        %v959 = vmul.f32 %v885, %v956
        %s960 = scalar_lea.vmem %s296, 24 [#allocation10]
        %961 = vst.msk [vmem:[%s960] sm:$0xff] %vm513, %v959
        %s962 = sand.u32 %s158, 1
        %s963 = scalar_lea.sflag [#allocation4], %s962
        %s964 = sand.u32 %s158, 1
        %s965 = smul.addr %s964, 32
        %s966 = scalar_lea.vmem [#allocation10], %s965
        // Predicated region
        $region57: #{tpu_custom_call.1} parent=39 // pred_check
          %p967 = pneg %p168
        $region58: #{tpu_custom_call.1} parent=39 // pred_check_branch
          %969 = sbr.rel (%p967) target = $region60
        $region59: #{tpu_custom_call.1} parent=39 // pred_region
          %s971 = ssub.s32 512, 512
          %972 = vsyncadd %s963, %s971
          %s973 = smul.addr %s28, 4
          %s974 = sadd.s32 %s29, %s973
          %s975 = smul.addr %s974, 128
          %s976 = scalar_lea.hbm %s5, %s975
          %s977 = sshll.u32 %s966, 4
          %s978 = int_to_ptr.vmem [resolvable:$true] %s977
          %983 = dma.vmem_to_hbm [thread:$0]  %s978, 512, %s976, %s963, 128, 128, 8
        $region60: #{tpu_custom_call.1} parent=39 // pred_fallthru
          _
      $region40: #{tpu_custom_call.1} parent=5 // pred_fallthru
        _
      %p984 = scmp.le.s32.totalorder 2, %s19
      // Predicated region
      $region61: #{tpu_custom_call.1} parent=5 // pred_check
        %p985 = pneg %p984
      $region62: #{tpu_custom_call.1} parent=5 // pred_check_branch
        %987 = sbr.rel (%p985) target = $region64
      $region63: #{tpu_custom_call.1} parent=5 // pred_region
        %s988 = ssub.s32 %s19, 2
        // Predicated region
        $region65: #{tpu_custom_call.1} parent=63 // pred_check
          %p989 = pneg %p174
        $region66: #{tpu_custom_call.1} parent=63 // pred_check_branch
          %991 = sbr.rel (%p989) target = $region68
        $region67: #{tpu_custom_call.1} parent=63 // pred_region
          %s992 = sand.u32 %s159, 1
          %s993 = scalar_lea.sflag [#allocation4], %s992
          %s994 = sand.u32 %s159, 1
          %s995 = smul.addr %s994, 32
          %s996 = scalar_lea.vmem [#allocation10], %s995
          %997 = dma.done %s993, 512
        $region68: #{tpu_custom_call.1} parent=63 // pred_fallthru
          _
      $region64: #{tpu_custom_call.1} parent=5 // pred_fallthru
        _
    $region6: #{tpu_custom_call.1} parent=1 // loop_footer
      %s23 = sadd.s32 1, %s19
    $region7: #{tpu_custom_call.1} parent=1 // loop_footer_branch
      %18 = sbr.rel target = $region3
    $region8: #{tpu_custom_call.1} parent=1 // loop_exit
      _
    %998 = vsyncpa [#allocation3], 1
    %s999 = scalar_lea.sflag [#allocation3], 1
    %1000 = vsyncpa %s999, 1
    %1001 = vsyncpa [#allocation6], 1
    %1002 = vsyncpa [#allocation9], 1
    %1003 = vsyncpa [#allocation4], 1
    %s1004 = scalar_lea.sflag [#allocation4], 1
    %1005 = vsyncpa %s1004, 1

// kernel: tpu_custom_call.1
$region0: #{tpu_custom_call.1}
  #allocation0 [shape = 'u32[]', space=smem, size = 0x4, offset = 0x4, fixed_abs, tag = 'smem constant byte address 0x4 - core index']
  #allocation1 [shape = 'u32[144,128]{1,0:T(1,128)}', space=vmem, size = 0x12000, scoped, tag = 'internal scratch']
  %s0 = inlined_call_operand.hbm [shape: bf16[2,8,32], index: 0, kind: input, shape index: {}]
  %s1 = inlined_call_operand.hbm [shape: bf16[32,32], index: 1, kind: input, shape index: {}]
  %s2 = inlined_call_operand.vmem [shape: f32[1,32], index: 2, kind: input, shape index: {}]
  %s3 = inlined_call_operand.hbm [shape: f32[8,16], index: 3, kind: input, shape index: {}]
  %s4 = inlined_call_operand.hbm [shape: f32[8,16], index: 4, kind: input, shape index: {}]
  %s5 = inlined_call_operand.hbm [shape: f32[2,4,8,16], index: 5, kind: output, shape index: {}]
  %s6 = sld [smem:[#allocation0]]
  $region69: #{tpu_custom_call.1} parent=0
    _
  %s8 = ssub.s32 1, %s6
  %s9 = scalar_select 0, %s8, %s6
  $region1: #{tpu_custom_call.1} parent=0
    #allocation2 [shape = 'u8[4096]{0}', space=vmem, size = 0x1000, scoped, tag = 'input window, operand 0']
    #allocation3 [shape = 's32[2]{0}', space=sflag, size = 0x8, scoped, tag = 'scoped memory for tpu_custom_call.1']
    #allocation4 [shape = 's32[2]{0}', space=sflag, size = 0x8, scoped, tag = 'scoped memory for tpu_custom_call.1']
    #allocation5 [shape = 'u8[8192]{0}', space=vmem, size = 0x2000, scoped, tag = 'input window, operand 1, single buffered']
    #allocation6 [shape = 's32[1]{0}', space=sflag, size = 0x4, scoped, tag = 'scoped memory for tpu_custom_call.1']
    #allocation7 [shape = 'u8[4096]{0}', space=vmem, size = 0x1000, scoped, tag = 'input window, operand 3, single buffered']
    #allocation8 [shape = 'u8[4096]{0}', space=vmem, size = 0x1000, scoped, tag = 'input window, operand 4, single buffered']
    #allocation9 [shape = 's32[1]{0}', space=sflag, size = 0x4, scoped, tag = 'scoped memory for tpu_custom_call.1']
    #allocation10 [shape = 'u8[32768]{0}', space=vmem, size = 0x8000, scoped, tag = 'output window, operand 0']
    %10 = vsyncpa [#allocation3], 0
    %s11 = scalar_lea.sflag [#allocation3], 1
    %12 = vsyncpa %s11, 0
    %13 = vsyncpa [#allocation6], 0
    %14 = vsyncpa [#allocation9], 0
    %15 = vsyncpa [#allocation4], 0
    %s16 = scalar_lea.sflag [#allocation4], 1
    %17 = vsyncpa %s16, 0
    loop: start=0, step=1, limit=4
    $region2: #{tpu_custom_call.1} parent=1 // loop_pre_header
      _
    $region3: #{tpu_custom_call.1} parent=1 // loop_header
      %s19 = sphi 0, %s23
      %p20 = scmp.ge.s32.totalorder %s19, 4
      %s26 = sphi 0, %s38
      %s27 = sphi 0, %s34
      %s28 = sphi 0, %s26
      %s29 = sphi 0, %s27
      %s30 = sphi 0, %s28
      %s31 = sphi 0, %s29
      %s43 = sphi 0, %s45
      %s46 = sphi 0, %s43
      %s47 = sphi 0, %s46
      %s63 = sphi 0, %s47
      %s67 = sphi 0, %s67
      %s69 = sphi 0, %s67
      %s70 = sphi 0, %s69
      %s84 = sphi 0, %s70
      %s88 = sphi 0, %s88
      %s90 = sphi 0, %s88
      %s91 = sphi 0, %s90
      %s105 = sphi 0, %s91
      %s109 = sphi 0, %s109
      %s111 = sphi 0, %s109
      %s112 = sphi 0, %s111
      %s126 = sphi 0, %s112
      %s130 = sphi 0, %s130
      %s132 = sphi 0, %s130
      %s133 = sphi 0, %s132
      %s147 = sphi 0, %s133
      %s155 = sphi 0, %s157
      %s158 = sphi 0, %s155
      %s159 = sphi 0, %s158
      %s175 = sphi 0, %s159
    $region4: #{tpu_custom_call.1} parent=1 // loop_header_branch
      %22 = sbr.rel (%p20) target = $region8
    $region5: #{tpu_custom_call.1} parent=1 // loop_body
      %s24 = ssub.s32 %s19, 1
      %s25 = ssub.s32 %s19, 2
      %s32 = sadd.s32 1, %s27
      %p33 = scmp.ge.s32.totalorder %s32, 1
      %s34 = scalar_select %p33, 0, %s32
      %s35 = sadd.s32 1, %s26
      %s36 = scalar_select %p33, %s35, %s26
      %p37 = scmp.ge.s32.totalorder %s36, 2
      %s38 = scalar_select %p37, 0, %s36
      %s39 = ssub.s32 %s26, %s38
      %s40 = ssub.s32 %s27, %s34
      %s41 = sor.u32 %s39, %s40
      %p42 = scmp.eq.s32.totalorder %s41, 0
      %s44 = sadd.s32 %s43, 1
      %s45 = scalar_select %p42, %s43, %s44
      %p48 = pneg %p42
      %p49 = scmp.eq.s32.totalorder %s19, 1
      %p50 = por %p48, %p49
      %p51 = scmp.ne.s32.totalorder %s43, %s46
      %p52 = scmp.eq.s32.totalorder %s19, 0
      %p53 = por %p51, %p52
      %p54 = scmp.ne.s32.totalorder %s43, %s46
      %p55 = scmp.eq.s32.totalorder %s24, 1
      %p56 = por %p54, %p55
      %p57 = scmp.ne.s32.totalorder %s46, %s47
      %p58 = scmp.eq.s32.totalorder %s24, 0
      %p59 = por %p57, %p58
      %p60 = scmp.ne.s32.totalorder %s46, %s47
      %p61 = scmp.eq.s32.totalorder %s25, 1
      %p62 = por %p60, %p61
      %p64 = scmp.ne.s32.totalorder %s47, %s63
      %p65 = scmp.eq.s32.totalorder %s25, 0
      %p66 = por %p64, %p65
      %s68 = sadd.s32 %s67, 1
      %p71 = scmp.eq.s32.totalorder %s19, 1
      %p72 = scmp.ne.s32.totalorder %s67, %s69
      %p73 = scmp.eq.s32.totalorder %s19, 0
      %p74 = por %p72, %p73
      %p75 = scmp.ne.s32.totalorder %s67, %s69
      %p76 = scmp.eq.s32.totalorder %s24, 1
      %p77 = por %p75, %p76
      %p78 = scmp.ne.s32.totalorder %s69, %s70
      %p79 = scmp.eq.s32.totalorder %s24, 0
      %p80 = por %p78, %p79
      %p81 = scmp.ne.s32.totalorder %s69, %s70
      %p82 = scmp.eq.s32.totalorder %s25, 1
      %p83 = por %p81, %p82
      %p85 = scmp.ne.s32.totalorder %s70, %s84
      %p86 = scmp.eq.s32.totalorder %s25, 0
      %p87 = por %p85, %p86
      %s89 = sadd.s32 %s88, 1
      %p92 = scmp.eq.s32.totalorder %s19, 1
      %p93 = scmp.ne.s32.totalorder %s88, %s90
      %p94 = scmp.eq.s32.totalorder %s19, 0
      %p95 = por %p93, %p94
      %p96 = scmp.ne.s32.totalorder %s88, %s90
      %p97 = scmp.eq.s32.totalorder %s24, 1
      %p98 = por %p96, %p97
      %p99 = scmp.ne.s32.totalorder %s90, %s91
      %p100 = scmp.eq.s32.totalorder %s24, 0
      %p101 = por %p99, %p100
      %p102 = scmp.ne.s32.totalorder %s90, %s91
      %p103 = scmp.eq.s32.totalorder %s25, 1
      %p104 = por %p102, %p103
      %p106 = scmp.ne.s32.totalorder %s91, %s105
      %p107 = scmp.eq.s32.totalorder %s25, 0
      %p108 = por %p106, %p107
      %s110 = sadd.s32 %s109, 1
      %p113 = scmp.eq.s32.totalorder %s19, 1
      %p114 = scmp.ne.s32.totalorder %s109, %s111
      %p115 = scmp.eq.s32.totalorder %s19, 0
      %p116 = por %p114, %p115
      %p117 = scmp.ne.s32.totalorder %s109, %s111
      %p118 = scmp.eq.s32.totalorder %s24, 1
      %p119 = por %p117, %p118
      %p120 = scmp.ne.s32.totalorder %s111, %s112
      %p121 = scmp.eq.s32.totalorder %s24, 0
      %p122 = por %p120, %p121
      %p123 = scmp.ne.s32.totalorder %s111, %s112
      %p124 = scmp.eq.s32.totalorder %s25, 1
      %p125 = por %p123, %p124
      %p127 = scmp.ne.s32.totalorder %s112, %s126
      %p128 = scmp.eq.s32.totalorder %s25, 0
      %p129 = por %p127, %p128
      %s131 = sadd.s32 %s130, 1
      %p134 = scmp.eq.s32.totalorder %s19, 1
      %p135 = scmp.ne.s32.totalorder %s130, %s132
      %p136 = scmp.eq.s32.totalorder %s19, 0
      %p137 = por %p135, %p136
      %p138 = scmp.ne.s32.totalorder %s130, %s132
      %p139 = scmp.eq.s32.totalorder %s24, 1
      %p140 = por %p138, %p139
      %p141 = scmp.ne.s32.totalorder %s132, %s133
      %p142 = scmp.eq.s32.totalorder %s24, 0
      %p143 = por %p141, %p142
      %p144 = scmp.ne.s32.totalorder %s132, %s133
      %p145 = scmp.eq.s32.totalorder %s25, 1
      %p146 = por %p144, %p145
      %p148 = scmp.ne.s32.totalorder %s133, %s147
      %p149 = scmp.eq.s32.totalorder %s25, 0
      %p150 = por %p148, %p149
      %s151 = ssub.s32 %s26, %s38
      %s152 = ssub.s32 %s27, %s34
      %s153 = sor.u32 %s151, %s152
      %p154 = scmp.eq.s32.totalorder %s153, 0
      %s156 = sadd.s32 %s155, 1
      %s157 = scalar_select %p154, %s155, %s156
      %p160 = pneg %p154
      %p161 = scmp.eq.s32.totalorder %s19, 1
      %p162 = por %p160, %p161
      %p163 = scmp.ne.s32.totalorder %s155, %s158
      %p164 = scmp.eq.s32.totalorder %s19, 0
      %p165 = por %p163, %p164
      %p166 = scmp.ne.s32.totalorder %s155, %s158
      %p167 = scmp.eq.s32.totalorder %s24, 1
      %p168 = por %p166, %p167
      %p169 = scmp.ne.s32.totalorder %s158, %s159
      %p170 = scmp.eq.s32.totalorder %s24, 0
      %p171 = por %p169, %p170
      %p172 = scmp.ne.s32.totalorder %s158, %s159
      %p173 = scmp.eq.s32.totalorder %s25, 1
      %p174 = por %p172, %p173
      %p176 = scmp.ne.s32.totalorder %s159, %s175
      %p177 = scmp.eq.s32.totalorder %s25, 0
      %p178 = por %p176, %p177
      %p179 = scmp.le.s32.totalorder 1, %s19
      %p180 = scmp.lt.s32.totalorder %s19, 3
      %p181 = pnand %p179, %p180
      %p182 = pneg %p181
      // Predicated region
      $region9: #{tpu_custom_call.1} parent=5 // pred_check
        _
      $region10: #{tpu_custom_call.1} parent=5 // pred_check_branch
        %184 = sbr.rel (%p181) target = $region12
      $region11: #{tpu_custom_call.1} parent=5 // pred_region
        %s185 = ssub.s32 %s19, 1
        // Predicated region
        $region13: #{tpu_custom_call.1} parent=11 // pred_check
          %p186 = pneg %p80
        $region14: #{tpu_custom_call.1} parent=11 // pred_check_branch
          %188 = sbr.rel (%p186) target = $region16
        $region15: #{tpu_custom_call.1} parent=11 // pred_region
          %s190 = ssub.s32 256, 256
          %191 = vsyncadd [#allocation6], %s190
          %s192 = sshll.u32 [#allocation5], 4
          %s193 = int_to_ptr.vmem [resolvable:$true] %s192
          %198 = dma.hbm_to_vmem [thread:$0]  %s1, 256, %s193, [#allocation6], 64, 64, 4
        $region16: #{tpu_custom_call.1} parent=11 // pred_fallthru
          _
        // Predicated region
        $region17: #{tpu_custom_call.1} parent=11 // pred_check
          %p199 = pneg %p101
        $region18: #{tpu_custom_call.1} parent=11 // pred_check_branch
          %201 = sbr.rel (%p199) target = $region20
        $region19: #{tpu_custom_call.1} parent=11 // pred_region
          _
        $region20: #{tpu_custom_call.1} parent=11 // pred_fallthru
          _
        // Predicated region
        $region21: #{tpu_custom_call.1} parent=11 // pred_check
          %p202 = pneg %p122
        $region22: #{tpu_custom_call.1} parent=11 // pred_check_branch
          %204 = sbr.rel (%p202) target = $region24
        $region23: #{tpu_custom_call.1} parent=11 // pred_region
          %s206 = ssub.s32 128, 128
          %207 = vsyncadd [#allocation6], %s206
          %s209 = sshll.u32 [#allocation7], 4
          %s210 = int_to_ptr.vmem [resolvable:$true] %s209
          %212 = dma.hbm_to_vmem [thread:$0]  %s3, 128, %s210, [#allocation6]
        $region24: #{tpu_custom_call.1} parent=11 // pred_fallthru
          _
        // Predicated region
        $region25: #{tpu_custom_call.1} parent=11 // pred_check
          %p213 = pneg %p143
        $region26: #{tpu_custom_call.1} parent=11 // pred_check_branch
          %215 = sbr.rel (%p213) target = $region28
        $region27: #{tpu_custom_call.1} parent=11 // pred_region
          %s217 = ssub.s32 128, 128
          %218 = vsyncadd [#allocation9], %s217
          %s220 = sshll.u32 [#allocation8], 4
          %s221 = int_to_ptr.vmem [resolvable:$true] %s220
          %223 = dma.hbm_to_vmem [thread:$0]  %s4, 128, %s221, [#allocation9]
        $region28: #{tpu_custom_call.1} parent=11 // pred_fallthru
          _
      $region12: #{tpu_custom_call.1} parent=5 // pred_fallthru
        _
      %p224 = scmp.lt.s32.totalorder %s19, 2
      // Predicated region
      $region29: #{tpu_custom_call.1} parent=5 // pred_check
        %p225 = pneg %p224
      $region30: #{tpu_custom_call.1} parent=5 // pred_check_branch
        %227 = sbr.rel (%p225) target = $region32
      $region31: #{tpu_custom_call.1} parent=5 // pred_region
        // Predicated region
        $region33: #{tpu_custom_call.1} parent=31 // pred_check
          %p228 = pneg %p53
        $region34: #{tpu_custom_call.1} parent=31 // pred_check_branch
          %230 = sbr.rel (%p228) target = $region36
        $region35: #{tpu_custom_call.1} parent=31 // pred_region
          %s231 = sand.u32 %s43, 1
          %s232 = scalar_lea.sflag [#allocation3], %s231
          %s233 = sand.u32 %s43, 1
          %s234 = smul.addr %s233, 4
          %s235 = scalar_lea.vmem [#allocation2], %s234
          %s237 = ssub.s32 64, 64
          %238 = vsyncadd %s232, %s237
          %s239 = sadd.s32 %s27, %s26
          %s240 = smul.addr %s239, 64
          %s241 = scalar_lea.hbm %s0, %s240
          %s243 = sshll.u32 %s235, 4
          %s244 = int_to_ptr.vmem [resolvable:$true] %s243
          %246 = dma.hbm_to_vmem [thread:$0]  %s241, 64, %s244, %s232
        $region36: #{tpu_custom_call.1} parent=31 // pred_fallthru
          _
      $region32: #{tpu_custom_call.1} parent=5 // pred_fallthru
        _
      %p247 = scmp.le.s32.totalorder 1, %s19
      %p248 = scmp.lt.s32.totalorder %s19, 3
      %p249 = pnand %p247, %p248
      %p250 = pneg %p249
      // Predicated region
      $region37: #{tpu_custom_call.1} parent=5 // pred_check
        _
      $region38: #{tpu_custom_call.1} parent=5 // pred_check_branch
        %252 = sbr.rel (%p249) target = $region40
      $region39: #{tpu_custom_call.1} parent=5 // pred_region
        %s253 = ssub.s32 %s19, 1
        %s254 = sand.u32 %s46, 1
        %s255 = scalar_lea.sflag [#allocation3], %s254
        %s256 = sand.u32 %s46, 1
        %s257 = smul.addr %s256, 4
        %s258 = scalar_lea.vmem [#allocation2], %s257
        // Predicated region
        $region41: #{tpu_custom_call.1} parent=39 // pred_check
          %p259 = pneg %p59
        $region42: #{tpu_custom_call.1} parent=39 // pred_check_branch
          %261 = sbr.rel (%p259) target = $region44
        $region43: #{tpu_custom_call.1} parent=39 // pred_region
          %262 = dma.done %s255, 64
        $region44: #{tpu_custom_call.1} parent=39 // pred_fallthru
          _
        // Predicated region
        $region45: #{tpu_custom_call.1} parent=39 // pred_check
          %p263 = pneg %p80
        $region46: #{tpu_custom_call.1} parent=39 // pred_check_branch
          %265 = sbr.rel (%p263) target = $region48
        $region47: #{tpu_custom_call.1} parent=39 // pred_region
          %266 = dma.done [#allocation6], 256
        $region48: #{tpu_custom_call.1} parent=39 // pred_fallthru
          _
        // Predicated region
        $region49: #{tpu_custom_call.1} parent=39 // pred_check
          %p267 = pneg %p122
        $region50: #{tpu_custom_call.1} parent=39 // pred_check_branch
          %269 = sbr.rel (%p267) target = $region52
        $region51: #{tpu_custom_call.1} parent=39 // pred_region
          %270 = dma.done [#allocation6], 128
        $region52: #{tpu_custom_call.1} parent=39 // pred_fallthru
          _
        // Predicated region
        $region53: #{tpu_custom_call.1} parent=39 // pred_check
          %p271 = pneg %p143
        $region54: #{tpu_custom_call.1} parent=39 // pred_check_branch
          %273 = sbr.rel (%p271) target = $region56
        $region55: #{tpu_custom_call.1} parent=39 // pred_region
          %274 = dma.done [#allocation9], 128
        $region56: #{tpu_custom_call.1} parent=39 // pred_fallthru
          _
        %s275 = sand.u32 %s46, 1
        %s276 = scalar_lea.sflag [#allocation3], %s275
        %s277 = sand.u32 %s46, 1
        %s278 = smul.addr %s277, 4
        %s279 = scalar_lea.vmem [#allocation2], %s278
        %p280 = pneg %p59
        %p281 = pneg %p56
        %p282 = pneg %p80
        %p283 = pneg %p77
        %p284 = pneg %p101
        %p285 = pneg %p98
        %p286 = pneg %p122
        %p287 = pneg %p119
        %p288 = pneg %p143
        %p289 = pneg %p140
        %p290 = pneg %p171
        %p291 = pneg %p168
        %s292 = sand.u32 %s158, 1
        %s293 = scalar_lea.sflag [#allocation4], %s292
        %s294 = sand.u32 %s158, 1
        %s295 = smul.addr %s294, 32
        %s296 = scalar_lea.vmem [#allocation10], %s295
        %v298 = vld [vmem:[%s258] sm:$0xf]
        %v299 = vld [vmem:[#allocation5] sm:$0xf]
        %v300 = vld [vmem:[#allocation5 + $0x4] sm:$0xf]
        %v301 = vld [vmem:[#allocation5 + $0x8] sm:$0xf]
        %v302 = vld [vmem:[#allocation5 + $0xc] sm:$0xf]
        %v303 = vld [vmem:[%s2] sm:$0x1]
        %v305 = vlaneseq
        %v306 = vshrl.u32 %v305, 7
        %v307 = vsub.s32 0, %v306
        %v308 = vrot.slane %v303, %v307
        %v314 = vunpack.c.l.b16 %v299
        %v315 = vunpack.c.l.b16 %v300
        %v316 = vunpack.c.l.b16 %v301
        %v317 = vunpack.c.l.b16 %v302
        %v318 = vpack.c.b16 %v315, %v314
        %v319 = vpack.c.b16 %v317, %v316
        %vm322 = vcmask 261120
        %v324 = vsel %vm322, %v298, 0
        %326 = vmatprep.subr.bf16.mxu0 0
        %327 = vmatpush1.bf16.msra.mxu0 0
        %328 = vmatprep.subr.bf16.mxu0 0
        %329 = vmatpush1.bf16.msra.mxu0 0
        %330 = vmatprep.subr.bf16.mxu0 0
        %331 = vmatpush1.bf16.msra.mxu0 0
        %332 = vmatprep.subr.bf16.mxu0 0
        %333 = vmatpush1.bf16.msra.mxu0 0
        %334 = vmatprep.subr.bf16.mxu0 0
        %335 = vmatpush1.bf16.msra.mxu0 0
        %336 = vmatprep.subr.bf16.mxu0 0
        %337 = vmatpush1.bf16.msra.mxu0 0
        %338 = vmatprep.subr.bf16.mxu0 0
        %339 = vmatpush1.bf16.msra.mxu0 %v319
        %340 = vmatprep.subr.bf16.mxu0 0
        %341 = vmatpush1.bf16.msra.mxu0 %v318
        %342 = vmatprep.subr.bf16.mxu0 0
        %343 = vmatpush2.bf16.msra.mxu0 0
        %344 = vmatprep.subr.bf16.mxu0 0
        %345 = vmatpush2.bf16.msra.mxu0 0
        %346 = vmatprep.subr.bf16.mxu0 0
        %347 = vmatpush2.bf16.msra.mxu0 0
        %348 = vmatprep.subr.bf16.mxu0 0
        %349 = vmatpush2.bf16.msra.mxu0 0
        %350 = vmatprep.subr.bf16.mxu0 0
        %351 = vmatpush2.bf16.msra.mxu0 0
        %352 = vmatprep.subr.bf16.mxu0 0
        %353 = vmatpush2.bf16.msra.mxu0 0
        %354 = vmatprep.subr.bf16.mxu0 0
        %355 = vmatpush2.bf16.msra.mxu0 0
        %356 = vmatprep.subr.bf16.mxu0 0
        %357 = vmatpush2.bf16.msra.mxu0 0
        %358 = vmatprep.mubr.bf16.mxu0 0
        %359 = vmatmul.mubr.bf16.gmra.mxu0 %v324
        %v360 = vpop.f32.mrf.mxu0
        %v361 = vadd.f32 %v308, %v360
        %v362 = vpop.f32.mrf.mxu0
        %v363 = vpop.f32.mrf.mxu0
        %v364 = vpop.f32.mrf.mxu0
        %365 = vdwg.mxu0
        %v366 = vld [vmem:[#allocation7] sm:$0xff]
        %vm367 = vcmask 64512
        %v369 = vsel %vm367, %v361, 0
        %371 = vmatprep.subr.mxu0 0.0
        %372 = vmatpush1.msra.mxu0 0.0
        %373 = vmatprep.subr.mxu0 0.0
        %374 = vmatpush1.msra.mxu0 0.0
        %375 = vmatprep.subr.mxu0 0.0
        %376 = vmatpush1.msra.mxu0 0.0
        %377 = vmatprep.subr.mxu0 0.0
        %378 = vmatpush1.msra.mxu0 0.0
        %379 = vmatprep.subr.mxu0 0.0
        %380 = vmatpush1.msra.mxu0 0.0
        %381 = vmatprep.subr.mxu0 0.0
        %382 = vmatpush1.msra.mxu0 0.0
        %383 = vmatprep.subr.mxu0 0.0
        %384 = vmatpush1.msra.mxu0 0.0
        %385 = vmatprep.subr.mxu0 0.0
        %386 = vmatpush1.msra.mxu0 0.0
        %387 = vmatprep.subr.mxu0 0.0
        %388 = vmatpush1.msra.mxu0 0.0
        %389 = vmatprep.subr.mxu0 0.0
        %390 = vmatpush1.msra.mxu0 0.0
        %391 = vmatprep.subr.mxu0 0.0
        %392 = vmatpush1.msra.mxu0 0.0
        %393 = vmatprep.subr.mxu0 0.0
        %394 = vmatpush1.msra.mxu0 0.0
        %395 = vmatprep.subr.mxu0 0.0
        %396 = vmatpush1.msra.mxu0 0.0
        %397 = vmatprep.subr.mxu0 0.0
        %398 = vmatpush1.msra.mxu0 0.0
        %399 = vmatprep.subr.mxu0 0.0
        %400 = vmatpush1.msra.mxu0 0.0
        %401 = vmatprep.subr.mxu0 0.0
        %402 = vmatpush1.msra.mxu0 %v366
        %403 = vmatprep.subr.mxu0 0.0
        %404 = vmatpush2.msra.mxu0 0.0
        %405 = vmatprep.subr.mxu0 0.0
        %406 = vmatpush2.msra.mxu0 0.0
        %407 = vmatprep.subr.mxu0 0.0
        %408 = vmatpush2.msra.mxu0 0.0
        %409 = vmatprep.subr.mxu0 0.0
        %410 = vmatpush2.msra.mxu0 0.0
        %411 = vmatprep.subr.mxu0 0.0
        %412 = vmatpush2.msra.mxu0 0.0
        %413 = vmatprep.subr.mxu0 0.0
        %414 = vmatpush2.msra.mxu0 0.0
        %415 = vmatprep.subr.mxu0 0.0
        %416 = vmatpush2.msra.mxu0 0.0
        %417 = vmatprep.subr.mxu0 0.0
        %418 = vmatpush2.msra.mxu0 0.0
        %419 = vmatprep.subr.mxu0 0.0
        %420 = vmatpush2.msra.mxu0 0.0
        %421 = vmatprep.subr.mxu0 0.0
        %422 = vmatpush2.msra.mxu0 0.0
        %423 = vmatprep.subr.mxu0 0.0
        %424 = vmatpush2.msra.mxu0 0.0
        %425 = vmatprep.subr.mxu0 0.0
        %426 = vmatpush2.msra.mxu0 0.0
        %427 = vmatprep.subr.mxu0 0.0
        %428 = vmatpush2.msra.mxu0 0.0
        %429 = vmatprep.subr.mxu0 0.0
        %430 = vmatpush2.msra.mxu0 0.0
        %431 = vmatprep.subr.mxu0 0.0
        %432 = vmatpush2.msra.mxu0 0.0
        %433 = vmatprep.subr.mxu0 0.0
        %434 = vmatpush2.msra.mxu0 0.0
        %435 = vmatprep.mubr.f32.mxu0 0.0
        %436 = vmatmul.mubr.f32.gmra.mxu0 %v369
        %v437 = vpop.f32.mrf.mxu0
        %v438 = vadd.f32 0.0, %v437
        %v439 = vpop.f32.mrf.mxu0
        %440 = vdwg.mxu0
        %v441 = vld [vmem:[#allocation8] sm:$0xff]
        %442 = vmatprep.subr.mxu0 0.0
        %443 = vmatpush1.msra.mxu0 0.0
        %444 = vmatprep.subr.mxu0 0.0
        %445 = vmatpush1.msra.mxu0 0.0
        %446 = vmatprep.subr.mxu0 0.0
        %447 = vmatpush1.msra.mxu0 0.0
        %448 = vmatprep.subr.mxu0 0.0
        %449 = vmatpush1.msra.mxu0 0.0
        %450 = vmatprep.subr.mxu0 0.0
        %451 = vmatpush1.msra.mxu0 0.0
        %452 = vmatprep.subr.mxu0 0.0
        %453 = vmatpush1.msra.mxu0 0.0
        %454 = vmatprep.subr.mxu0 0.0
        %455 = vmatpush1.msra.mxu0 0.0
        %456 = vmatprep.subr.mxu0 0.0
        %457 = vmatpush1.msra.mxu0 0.0
        %458 = vmatprep.subr.mxu0 0.0
        %459 = vmatpush1.msra.mxu0 0.0
        %460 = vmatprep.subr.mxu0 0.0
        %461 = vmatpush1.msra.mxu0 0.0
        %462 = vmatprep.subr.mxu0 0.0
        %463 = vmatpush1.msra.mxu0 0.0
        %464 = vmatprep.subr.mxu0 0.0
        %465 = vmatpush1.msra.mxu0 0.0
        %466 = vmatprep.subr.mxu0 0.0
        %467 = vmatpush1.msra.mxu0 0.0
        %468 = vmatprep.subr.mxu0 0.0
        %469 = vmatpush1.msra.mxu0 0.0
        %470 = vmatprep.subr.mxu0 0.0
        %471 = vmatpush1.msra.mxu0 0.0
        %472 = vmatprep.subr.mxu0 0.0
        %473 = vmatpush1.msra.mxu0 %v441
        %474 = vmatprep.subr.mxu0 0.0
        %475 = vmatpush2.msra.mxu0 0.0
        %476 = vmatprep.subr.mxu0 0.0
        %477 = vmatpush2.msra.mxu0 0.0
        %478 = vmatprep.subr.mxu0 0.0
        %479 = vmatpush2.msra.mxu0 0.0
        %480 = vmatprep.subr.mxu0 0.0
        %481 = vmatpush2.msra.mxu0 0.0
        %482 = vmatprep.subr.mxu0 0.0
        %483 = vmatpush2.msra.mxu0 0.0
        %484 = vmatprep.subr.mxu0 0.0
        %485 = vmatpush2.msra.mxu0 0.0
        %486 = vmatprep.subr.mxu0 0.0
        %487 = vmatpush2.msra.mxu0 0.0
        %488 = vmatprep.subr.mxu0 0.0
        %489 = vmatpush2.msra.mxu0 0.0
        %490 = vmatprep.subr.mxu0 0.0
        %491 = vmatpush2.msra.mxu0 0.0
        %492 = vmatprep.subr.mxu0 0.0
        %493 = vmatpush2.msra.mxu0 0.0
        %494 = vmatprep.subr.mxu0 0.0
        %495 = vmatpush2.msra.mxu0 0.0
        %496 = vmatprep.subr.mxu0 0.0
        %497 = vmatpush2.msra.mxu0 0.0
        %498 = vmatprep.subr.mxu0 0.0
        %499 = vmatpush2.msra.mxu0 0.0
        %500 = vmatprep.subr.mxu0 0.0
        %501 = vmatpush2.msra.mxu0 0.0
        %502 = vmatprep.subr.mxu0 0.0
        %503 = vmatpush2.msra.mxu0 0.0
        %504 = vmatprep.subr.mxu0 0.0
        %505 = vmatpush2.msra.mxu0 0.0
        %506 = vmatprep.mubr.f32.mxu0 0.0
        %507 = vmatmul.mubr.f32.gmra.mxu0 %v369
        %v508 = vpop.f32.mrf.mxu0
        %v509 = vadd.f32 0.0, %v508
        %v510 = vpop.f32.mrf.mxu0
        %511 = vdwg.mxu0
        %v512 = vmul.f32 %v438, %v509
        %vm513 = vcmask 130048
        %514 = vst.msk [vmem:[%s296] sm:$0xff] %vm513, %v512
        %v515 = vld [vmem:[#allocation7] sm:$0xff]
        %516 = vrot.lane.b32.xlu0 %v361, 120
        %v517 = vpop.permute.xlu0 %516
        %v518 = vsel %vm367, %v517, 0
        %520 = vmatprep.subr.mxu0 0.0
        %521 = vmatpush1.msra.mxu0 0.0
        %522 = vmatprep.subr.mxu0 0.0
        %523 = vmatpush1.msra.mxu0 0.0
        %524 = vmatprep.subr.mxu0 0.0
        %525 = vmatpush1.msra.mxu0 0.0
        %526 = vmatprep.subr.mxu0 0.0
        %527 = vmatpush1.msra.mxu0 0.0
        %528 = vmatprep.subr.mxu0 0.0
        %529 = vmatpush1.msra.mxu0 0.0
        %530 = vmatprep.subr.mxu0 0.0
        %531 = vmatpush1.msra.mxu0 0.0
        %532 = vmatprep.subr.mxu0 0.0
        %533 = vmatpush1.msra.mxu0 0.0
        %534 = vmatprep.subr.mxu0 0.0
        %535 = vmatpush1.msra.mxu0 0.0
        %536 = vmatprep.subr.mxu0 0.0
        %537 = vmatpush1.msra.mxu0 0.0
        %538 = vmatprep.subr.mxu0 0.0
        %539 = vmatpush1.msra.mxu0 0.0
        %540 = vmatprep.subr.mxu0 0.0
        %541 = vmatpush1.msra.mxu0 0.0
        %542 = vmatprep.subr.mxu0 0.0
        %543 = vmatpush1.msra.mxu0 0.0
        %544 = vmatprep.subr.mxu0 0.0
        %545 = vmatpush1.msra.mxu0 0.0
        %546 = vmatprep.subr.mxu0 0.0
        %547 = vmatpush1.msra.mxu0 0.0
        %548 = vmatprep.subr.mxu0 0.0
        %549 = vmatpush1.msra.mxu0 0.0
        %550 = vmatprep.subr.mxu0 0.0
        %551 = vmatpush1.msra.mxu0 %v515
        %552 = vmatprep.subr.mxu0 0.0
        %553 = vmatpush2.msra.mxu0 0.0
        %554 = vmatprep.subr.mxu0 0.0
        %555 = vmatpush2.msra.mxu0 0.0
        %556 = vmatprep.subr.mxu0 0.0
        %557 = vmatpush2.msra.mxu0 0.0
        %558 = vmatprep.subr.mxu0 0.0
        %559 = vmatpush2.msra.mxu0 0.0
        %560 = vmatprep.subr.mxu0 0.0
        %561 = vmatpush2.msra.mxu0 0.0
        %562 = vmatprep.subr.mxu0 0.0
        %563 = vmatpush2.msra.mxu0 0.0
        %564 = vmatprep.subr.mxu0 0.0
        %565 = vmatpush2.msra.mxu0 0.0
        %566 = vmatprep.subr.mxu0 0.0
        %567 = vmatpush2.msra.mxu0 0.0
        %568 = vmatprep.subr.mxu0 0.0
        %569 = vmatpush2.msra.mxu0 0.0
        %570 = vmatprep.subr.mxu0 0.0
        %571 = vmatpush2.msra.mxu0 0.0
        %572 = vmatprep.subr.mxu0 0.0
        %573 = vmatpush2.msra.mxu0 0.0
        %574 = vmatprep.subr.mxu0 0.0
        %575 = vmatpush2.msra.mxu0 0.0
        %576 = vmatprep.subr.mxu0 0.0
        %577 = vmatpush2.msra.mxu0 0.0
        %578 = vmatprep.subr.mxu0 0.0
        %579 = vmatpush2.msra.mxu0 0.0
        %580 = vmatprep.subr.mxu0 0.0
        %581 = vmatpush2.msra.mxu0 0.0
        %582 = vmatprep.subr.mxu0 0.0
        %583 = vmatpush2.msra.mxu0 0.0
        %584 = vmatprep.mubr.f32.mxu0 0.0
        %585 = vmatmul.mubr.f32.gmra.mxu0 %v518
        %v586 = vpop.f32.mrf.mxu0
        %v587 = vadd.f32 0.0, %v586
        %v588 = vpop.f32.mrf.mxu0
        %589 = vdwg.mxu0
        %v590 = vld [vmem:[#allocation8] sm:$0xff]
        %591 = vmatprep.subr.mxu0 0.0
        %592 = vmatpush1.msra.mxu0 0.0
        %593 = vmatprep.subr.mxu0 0.0
        %594 = vmatpush1.msra.mxu0 0.0
        %595 = vmatprep.subr.mxu0 0.0
        %596 = vmatpush1.msra.mxu0 0.0
        %597 = vmatprep.subr.mxu0 0.0
        %598 = vmatpush1.msra.mxu0 0.0
        %599 = vmatprep.subr.mxu0 0.0
        %600 = vmatpush1.msra.mxu0 0.0
        %601 = vmatprep.subr.mxu0 0.0
        %602 = vmatpush1.msra.mxu0 0.0
        %603 = vmatprep.subr.mxu0 0.0
        %604 = vmatpush1.msra.mxu0 0.0
        %605 = vmatprep.subr.mxu0 0.0
        %606 = vmatpush1.msra.mxu0 0.0
        %607 = vmatprep.subr.mxu0 0.0
        %608 = vmatpush1.msra.mxu0 0.0
        %609 = vmatprep.subr.mxu0 0.0
        %610 = vmatpush1.msra.mxu0 0.0
        %611 = vmatprep.subr.mxu0 0.0
        %612 = vmatpush1.msra.mxu0 0.0
        %613 = vmatprep.subr.mxu0 0.0
        %614 = vmatpush1.msra.mxu0 0.0
        %615 = vmatprep.subr.mxu0 0.0
        %616 = vmatpush1.msra.mxu0 0.0
        %617 = vmatprep.subr.mxu0 0.0
        %618 = vmatpush1.msra.mxu0 0.0
        %619 = vmatprep.subr.mxu0 0.0
        %620 = vmatpush1.msra.mxu0 0.0
        %621 = vmatprep.subr.mxu0 0.0
        %622 = vmatpush1.msra.mxu0 %v590
        %623 = vmatprep.subr.mxu0 0.0
        %624 = vmatpush2.msra.mxu0 0.0
        %625 = vmatprep.subr.mxu0 0.0
        %626 = vmatpush2.msra.mxu0 0.0
        %627 = vmatprep.subr.mxu0 0.0
        %628 = vmatpush2.msra.mxu0 0.0
        %629 = vmatprep.subr.mxu0 0.0
        %630 = vmatpush2.msra.mxu0 0.0
        %631 = vmatprep.subr.mxu0 0.0
        %632 = vmatpush2.msra.mxu0 0.0
        %633 = vmatprep.subr.mxu0 0.0
        %634 = vmatpush2.msra.mxu0 0.0
        %635 = vmatprep.subr.mxu0 0.0
        %636 = vmatpush2.msra.mxu0 0.0
        %637 = vmatprep.subr.mxu0 0.0
        %638 = vmatpush2.msra.mxu0 0.0
        %639 = vmatprep.subr.mxu0 0.0
        %640 = vmatpush2.msra.mxu0 0.0
        %641 = vmatprep.subr.mxu0 0.0
        %642 = vmatpush2.msra.mxu0 0.0
        %643 = vmatprep.subr.mxu0 0.0
        %644 = vmatpush2.msra.mxu0 0.0
        %645 = vmatprep.subr.mxu0 0.0
        %646 = vmatpush2.msra.mxu0 0.0
        %647 = vmatprep.subr.mxu0 0.0
        %648 = vmatpush2.msra.mxu0 0.0
        %649 = vmatprep.subr.mxu0 0.0
        %650 = vmatpush2.msra.mxu0 0.0
        %651 = vmatprep.subr.mxu0 0.0
        %652 = vmatpush2.msra.mxu0 0.0
        %653 = vmatprep.subr.mxu0 0.0
        %654 = vmatpush2.msra.mxu0 0.0
        %655 = vmatprep.mubr.f32.mxu0 0.0
        %656 = vmatmul.mubr.f32.gmra.mxu0 %v518
        %v657 = vpop.f32.mrf.mxu0
        %v658 = vadd.f32 0.0, %v657
        %v659 = vpop.f32.mrf.mxu0
        %660 = vdwg.mxu0
        %v661 = vmul.f32 %v587, %v658
        %s662 = scalar_lea.vmem %s296, 8 [#allocation10]
        %663 = vst.msk [vmem:[%s662] sm:$0xff] %vm513, %v661
        %v664 = vld [vmem:[#allocation7] sm:$0xff]
        %665 = vrot.lane.b32.xlu0 %v361, 112
        %v666 = vpop.permute.xlu0 %665
        %v667 = vsel %vm367, %v666, 0
        %669 = vmatprep.subr.mxu0 0.0
        %670 = vmatpush1.msra.mxu0 0.0
        %671 = vmatprep.subr.mxu0 0.0
        %672 = vmatpush1.msra.mxu0 0.0
        %673 = vmatprep.subr.mxu0 0.0
        %674 = vmatpush1.msra.mxu0 0.0
        %675 = vmatprep.subr.mxu0 0.0
        %676 = vmatpush1.msra.mxu0 0.0
        %677 = vmatprep.subr.mxu0 0.0
        %678 = vmatpush1.msra.mxu0 0.0
        %679 = vmatprep.subr.mxu0 0.0
        %680 = vmatpush1.msra.mxu0 0.0
        %681 = vmatprep.subr.mxu0 0.0
        %682 = vmatpush1.msra.mxu0 0.0
        %683 = vmatprep.subr.mxu0 0.0
        %684 = vmatpush1.msra.mxu0 0.0
        %685 = vmatprep.subr.mxu0 0.0
        %686 = vmatpush1.msra.mxu0 0.0
        %687 = vmatprep.subr.mxu0 0.0
        %688 = vmatpush1.msra.mxu0 0.0
        %689 = vmatprep.subr.mxu0 0.0
        %690 = vmatpush1.msra.mxu0 0.0
        %691 = vmatprep.subr.mxu0 0.0
        %692 = vmatpush1.msra.mxu0 0.0
        %693 = vmatprep.subr.mxu0 0.0
        %694 = vmatpush1.msra.mxu0 0.0
        %695 = vmatprep.subr.mxu0 0.0
        %696 = vmatpush1.msra.mxu0 0.0
        %697 = vmatprep.subr.mxu0 0.0
        %698 = vmatpush1.msra.mxu0 0.0
        %699 = vmatprep.subr.mxu0 0.0
        %700 = vmatpush1.msra.mxu0 %v664
        %701 = vmatprep.subr.mxu0 0.0
        %702 = vmatpush2.msra.mxu0 0.0
        %703 = vmatprep.subr.mxu0 0.0
        %704 = vmatpush2.msra.mxu0 0.0
        %705 = vmatprep.subr.mxu0 0.0
        %706 = vmatpush2.msra.mxu0 0.0
        %707 = vmatprep.subr.mxu0 0.0
        %708 = vmatpush2.msra.mxu0 0.0
        %709 = vmatprep.subr.mxu0 0.0
        %710 = vmatpush2.msra.mxu0 0.0
        %711 = vmatprep.subr.mxu0 0.0
        %712 = vmatpush2.msra.mxu0 0.0
        %713 = vmatprep.subr.mxu0 0.0
        %714 = vmatpush2.msra.mxu0 0.0
        %715 = vmatprep.subr.mxu0 0.0
        %716 = vmatpush2.msra.mxu0 0.0
        %717 = vmatprep.subr.mxu0 0.0
        %718 = vmatpush2.msra.mxu0 0.0
        %719 = vmatprep.subr.mxu0 0.0
        %720 = vmatpush2.msra.mxu0 0.0
        %721 = vmatprep.subr.mxu0 0.0
        %722 = vmatpush2.msra.mxu0 0.0
        %723 = vmatprep.subr.mxu0 0.0
        %724 = vmatpush2.msra.mxu0 0.0
        %725 = vmatprep.subr.mxu0 0.0
        %726 = vmatpush2.msra.mxu0 0.0
        %727 = vmatprep.subr.mxu0 0.0
        %728 = vmatpush2.msra.mxu0 0.0
        %729 = vmatprep.subr.mxu0 0.0
        %730 = vmatpush2.msra.mxu0 0.0
        %731 = vmatprep.subr.mxu0 0.0
        %732 = vmatpush2.msra.mxu0 0.0
        %733 = vmatprep.mubr.f32.mxu0 0.0
        %734 = vmatmul.mubr.f32.gmra.mxu0 %v667
        %v735 = vpop.f32.mrf.mxu0
        %v736 = vadd.f32 0.0, %v735
        %v737 = vpop.f32.mrf.mxu0
        %738 = vdwg.mxu0
        %v739 = vld [vmem:[#allocation8] sm:$0xff]
        %740 = vmatprep.subr.mxu0 0.0
        %741 = vmatpush1.msra.mxu0 0.0
        %742 = vmatprep.subr.mxu0 0.0
        %743 = vmatpush1.msra.mxu0 0.0
        %744 = vmatprep.subr.mxu0 0.0
        %745 = vmatpush1.msra.mxu0 0.0
        %746 = vmatprep.subr.mxu0 0.0
        %747 = vmatpush1.msra.mxu0 0.0
        %748 = vmatprep.subr.mxu0 0.0
        %749 = vmatpush1.msra.mxu0 0.0
        %750 = vmatprep.subr.mxu0 0.0
        %751 = vmatpush1.msra.mxu0 0.0
        %752 = vmatprep.subr.mxu0 0.0
        %753 = vmatpush1.msra.mxu0 0.0
        %754 = vmatprep.subr.mxu0 0.0
        %755 = vmatpush1.msra.mxu0 0.0
        %756 = vmatprep.subr.mxu0 0.0
        %757 = vmatpush1.msra.mxu0 0.0
        %758 = vmatprep.subr.mxu0 0.0
        %759 = vmatpush1.msra.mxu0 0.0
        %760 = vmatprep.subr.mxu0 0.0
        %761 = vmatpush1.msra.mxu0 0.0
        %762 = vmatprep.subr.mxu0 0.0
        %763 = vmatpush1.msra.mxu0 0.0
        %764 = vmatprep.subr.mxu0 0.0
        %765 = vmatpush1.msra.mxu0 0.0
        %766 = vmatprep.subr.mxu0 0.0
        %767 = vmatpush1.msra.mxu0 0.0
        %768 = vmatprep.subr.mxu0 0.0
        %769 = vmatpush1.msra.mxu0 0.0
        %770 = vmatprep.subr.mxu0 0.0
        %771 = vmatpush1.msra.mxu0 %v739
        %772 = vmatprep.subr.mxu0 0.0
        %773 = vmatpush2.msra.mxu0 0.0
        %774 = vmatprep.subr.mxu0 0.0
        %775 = vmatpush2.msra.mxu0 0.0
        %776 = vmatprep.subr.mxu0 0.0
        %777 = vmatpush2.msra.mxu0 0.0
        %778 = vmatprep.subr.mxu0 0.0
        %779 = vmatpush2.msra.mxu0 0.0
        %780 = vmatprep.subr.mxu0 0.0
        %781 = vmatpush2.msra.mxu0 0.0
        %782 = vmatprep.subr.mxu0 0.0
        %783 = vmatpush2.msra.mxu0 0.0
        %784 = vmatprep.subr.mxu0 0.0
        %785 = vmatpush2.msra.mxu0 0.0
        %786 = vmatprep.subr.mxu0 0.0
        %787 = vmatpush2.msra.mxu0 0.0
        %788 = vmatprep.subr.mxu0 0.0
        %789 = vmatpush2.msra.mxu0 0.0
        %790 = vmatprep.subr.mxu0 0.0
        %791 = vmatpush2.msra.mxu0 0.0
        %792 = vmatprep.subr.mxu0 0.0
        %793 = vmatpush2.msra.mxu0 0.0
        %794 = vmatprep.subr.mxu0 0.0
        %795 = vmatpush2.msra.mxu0 0.0
        %796 = vmatprep.subr.mxu0 0.0
        %797 = vmatpush2.msra.mxu0 0.0
        %798 = vmatprep.subr.mxu0 0.0
        %799 = vmatpush2.msra.mxu0 0.0
        %800 = vmatprep.subr.mxu0 0.0
        %801 = vmatpush2.msra.mxu0 0.0
        %802 = vmatprep.subr.mxu0 0.0
        %803 = vmatpush2.msra.mxu0 0.0
        %804 = vmatprep.mubr.f32.mxu0 0.0
        %805 = vmatmul.mubr.f32.gmra.mxu0 %v667
        %v806 = vpop.f32.mrf.mxu0
        %v807 = vadd.f32 0.0, %v806
        %v808 = vpop.f32.mrf.mxu0
        %809 = vdwg.mxu0
        %v810 = vmul.f32 %v736, %v807
        %s811 = scalar_lea.vmem %s296, 16 [#allocation10]
        %812 = vst.msk [vmem:[%s811] sm:$0xff] %vm513, %v810
        %v813 = vld [vmem:[#allocation7] sm:$0xff]
        %814 = vrot.lane.b32.xlu0 %v361, 104
        %v815 = vpop.permute.xlu0 %814
        %v816 = vsel %vm367, %v815, 0
        %818 = vmatprep.subr.mxu0 0.0
        %819 = vmatpush1.msra.mxu0 0.0
        %820 = vmatprep.subr.mxu0 0.0
        %821 = vmatpush1.msra.mxu0 0.0
        %822 = vmatprep.subr.mxu0 0.0
        %823 = vmatpush1.msra.mxu0 0.0
        %824 = vmatprep.subr.mxu0 0.0
        %825 = vmatpush1.msra.mxu0 0.0
        %826 = vmatprep.subr.mxu0 0.0
        %827 = vmatpush1.msra.mxu0 0.0
        %828 = vmatprep.subr.mxu0 0.0
        %829 = vmatpush1.msra.mxu0 0.0
        %830 = vmatprep.subr.mxu0 0.0
        %831 = vmatpush1.msra.mxu0 0.0
        %832 = vmatprep.subr.mxu0 0.0
        %833 = vmatpush1.msra.mxu0 0.0
        %834 = vmatprep.subr.mxu0 0.0
        %835 = vmatpush1.msra.mxu0 0.0
        %836 = vmatprep.subr.mxu0 0.0
        %837 = vmatpush1.msra.mxu0 0.0
        %838 = vmatprep.subr.mxu0 0.0
        %839 = vmatpush1.msra.mxu0 0.0
        %840 = vmatprep.subr.mxu0 0.0
        %841 = vmatpush1.msra.mxu0 0.0
        %842 = vmatprep.subr.mxu0 0.0
        %843 = vmatpush1.msra.mxu0 0.0
        %844 = vmatprep.subr.mxu0 0.0
        %845 = vmatpush1.msra.mxu0 0.0
        %846 = vmatprep.subr.mxu0 0.0
        %847 = vmatpush1.msra.mxu0 0.0
        %848 = vmatprep.subr.mxu0 0.0
        %849 = vmatpush1.msra.mxu0 %v813
        %850 = vmatprep.subr.mxu0 0.0
        %851 = vmatpush2.msra.mxu0 0.0
        %852 = vmatprep.subr.mxu0 0.0
        %853 = vmatpush2.msra.mxu0 0.0
        %854 = vmatprep.subr.mxu0 0.0
        %855 = vmatpush2.msra.mxu0 0.0
        %856 = vmatprep.subr.mxu0 0.0
        %857 = vmatpush2.msra.mxu0 0.0
        %858 = vmatprep.subr.mxu0 0.0
        %859 = vmatpush2.msra.mxu0 0.0
        %860 = vmatprep.subr.mxu0 0.0
        %861 = vmatpush2.msra.mxu0 0.0
        %862 = vmatprep.subr.mxu0 0.0
        %863 = vmatpush2.msra.mxu0 0.0
        %864 = vmatprep.subr.mxu0 0.0
        %865 = vmatpush2.msra.mxu0 0.0
        %866 = vmatprep.subr.mxu0 0.0
        %867 = vmatpush2.msra.mxu0 0.0
        %868 = vmatprep.subr.mxu0 0.0
        %869 = vmatpush2.msra.mxu0 0.0
        %870 = vmatprep.subr.mxu0 0.0
        %871 = vmatpush2.msra.mxu0 0.0
        %872 = vmatprep.subr.mxu0 0.0
        %873 = vmatpush2.msra.mxu0 0.0
        %874 = vmatprep.subr.mxu0 0.0
        %875 = vmatpush2.msra.mxu0 0.0
        %876 = vmatprep.subr.mxu0 0.0
        %877 = vmatpush2.msra.mxu0 0.0
        %878 = vmatprep.subr.mxu0 0.0
        %879 = vmatpush2.msra.mxu0 0.0
        %880 = vmatprep.subr.mxu0 0.0
        %881 = vmatpush2.msra.mxu0 0.0
        %882 = vmatprep.mubr.f32.mxu0 0.0
        %883 = vmatmul.mubr.f32.gmra.mxu0 %v816
        %v884 = vpop.f32.mrf.mxu0
        %v885 = vadd.f32 0.0, %v884
        %v886 = vpop.f32.mrf.mxu0
        %887 = vdwg.mxu0
        %v888 = vld [vmem:[#allocation8] sm:$0xff]
        %889 = vmatprep.subr.mxu0 0.0
        %890 = vmatpush1.msra.mxu0 0.0
        %891 = vmatprep.subr.mxu0 0.0
        %892 = vmatpush1.msra.mxu0 0.0
        %893 = vmatprep.subr.mxu0 0.0
        %894 = vmatpush1.msra.mxu0 0.0
        %895 = vmatprep.subr.mxu0 0.0
        %896 = vmatpush1.msra.mxu0 0.0
        %897 = vmatprep.subr.mxu0 0.0
        %898 = vmatpush1.msra.mxu0 0.0
        %899 = vmatprep.subr.mxu0 0.0
        %900 = vmatpush1.msra.mxu0 0.0
        %901 = vmatprep.subr.mxu0 0.0
        %902 = vmatpush1.msra.mxu0 0.0
        %903 = vmatprep.subr.mxu0 0.0
        %904 = vmatpush1.msra.mxu0 0.0
        %905 = vmatprep.subr.mxu0 0.0
        %906 = vmatpush1.msra.mxu0 0.0
        %907 = vmatprep.subr.mxu0 0.0
        %908 = vmatpush1.msra.mxu0 0.0
        %909 = vmatprep.subr.mxu0 0.0
        %910 = vmatpush1.msra.mxu0 0.0
        %911 = vmatprep.subr.mxu0 0.0
        %912 = vmatpush1.msra.mxu0 0.0
        %913 = vmatprep.subr.mxu0 0.0
        %914 = vmatpush1.msra.mxu0 0.0
        %915 = vmatprep.subr.mxu0 0.0
        %916 = vmatpush1.msra.mxu0 0.0
        %917 = vmatprep.subr.mxu0 0.0
        %918 = vmatpush1.msra.mxu0 0.0
        %919 = vmatprep.subr.mxu0 0.0
        %920 = vmatpush1.msra.mxu0 %v888
        %921 = vmatprep.subr.mxu0 0.0
        %922 = vmatpush2.msra.mxu0 0.0
        %923 = vmatprep.subr.mxu0 0.0
        %924 = vmatpush2.msra.mxu0 0.0
        %925 = vmatprep.subr.mxu0 0.0
        %926 = vmatpush2.msra.mxu0 0.0
        %927 = vmatprep.subr.mxu0 0.0
        %928 = vmatpush2.msra.mxu0 0.0
        %929 = vmatprep.subr.mxu0 0.0
        %930 = vmatpush2.msra.mxu0 0.0
        %931 = vmatprep.subr.mxu0 0.0
        %932 = vmatpush2.msra.mxu0 0.0
        %933 = vmatprep.subr.mxu0 0.0
        %934 = vmatpush2.msra.mxu0 0.0
        %935 = vmatprep.subr.mxu0 0.0
        %936 = vmatpush2.msra.mxu0 0.0
        %937 = vmatprep.subr.mxu0 0.0
        %938 = vmatpush2.msra.mxu0 0.0
        %939 = vmatprep.subr.mxu0 0.0
        %940 = vmatpush2.msra.mxu0 0.0
        %941 = vmatprep.subr.mxu0 0.0
        %942 = vmatpush2.msra.mxu0 0.0
        %943 = vmatprep.subr.mxu0 0.0
        %944 = vmatpush2.msra.mxu0 0.0
        %945 = vmatprep.subr.mxu0 0.0
        %946 = vmatpush2.msra.mxu0 0.0
        %947 = vmatprep.subr.mxu0 0.0
        %948 = vmatpush2.msra.mxu0 0.0
        %949 = vmatprep.subr.mxu0 0.0
        %950 = vmatpush2.msra.mxu0 0.0
        %951 = vmatprep.subr.mxu0 0.0
        %952 = vmatpush2.msra.mxu0 0.0
        %953 = vmatprep.mubr.f32.mxu0 0.0
        %954 = vmatmul.mubr.f32.gmra.mxu0 %v816
        %v955 = vpop.f32.mrf.mxu0
        %v956 = vadd.f32 0.0, %v955
        %v957 = vpop.f32.mrf.mxu0
        %958 = vdwg.mxu0
        %v959 = vmul.f32 %v885, %v956
        %s960 = scalar_lea.vmem %s296, 24 [#allocation10]
        %961 = vst.msk [vmem:[%s960] sm:$0xff] %vm513, %v959
        %s962 = sand.u32 %s158, 1
        %s963 = scalar_lea.sflag [#allocation4], %s962
        %s964 = sand.u32 %s158, 1
        %s965 = smul.addr %s964, 32
        %s966 = scalar_lea.vmem [#allocation10], %s965
        // Predicated region
        $region57: #{tpu_custom_call.1} parent=39 // pred_check
          %p967 = pneg %p168
        $region58: #{tpu_custom_call.1} parent=39 // pred_check_branch
          %969 = sbr.rel (%p967) target = $region60
        $region59: #{tpu_custom_call.1} parent=39 // pred_region
          %s971 = ssub.s32 512, 512
          %972 = vsyncadd %s963, %s971
          %s973 = smul.addr %s28, 4
          %s974 = sadd.s32 %s29, %s973
          %s975 = smul.addr %s974, 128
          %s976 = scalar_lea.hbm %s5, %s975
          %s977 = sshll.u32 %s966, 4
          %s978 = int_to_ptr.vmem [resolvable:$true] %s977
          %983 = dma.vmem_to_hbm [thread:$0]  %s978, 512, %s976, %s963, 128, 128, 8
        $region60: #{tpu_custom_call.1} parent=39 // pred_fallthru
          _
      $region40: #{tpu_custom_call.1} parent=5 // pred_fallthru
        _
      %p984 = scmp.le.s32.totalorder 2, %s19
      // Predicated region
      $region61: #{tpu_custom_call.1} parent=5 // pred_check
        %p985 = pneg %p984
      $region62: #{tpu_custom_call.1} parent=5 // pred_check_branch
        %987 = sbr.rel (%p985) target = $region64
      $region63: #{tpu_custom_call.1} parent=5 // pred_region
        %s988 = ssub.s32 %s19, 2
        // Predicated region
        $region65: #{tpu_custom_call.1} parent=63 // pred_check
          %p989 = pneg %p174
        $region66: #{tpu_custom_call.1} parent=63 // pred_check_branch
          %991 = sbr.rel (%p989) target = $region68
        $region67: #{tpu_custom_call.1} parent=63 // pred_region
          %s992 = sand.u32 %s159, 1
          %s993 = scalar_lea.sflag [#allocation4], %s992
          %s994 = sand.u32 %s159, 1
          %s995 = smul.addr %s994, 32
          %s996 = scalar_lea.vmem [#allocation10], %s995
          %997 = dma.done %s993, 512
        $region68: #{tpu_custom_call.1} parent=63 // pred_fallthru
          _
      $region64: #{tpu_custom_call.1} parent=5 // pred_fallthru
        _
    $region6: #{tpu_custom_call.1} parent=1 // loop_footer
      %s23 = sadd.s32 1, %s19
    $region7: #{tpu_custom_call.1} parent=1 // loop_footer_branch
      %18 = sbr.rel target = $region3
    $region8: #{tpu_custom_call.1} parent=1 // loop_exit
      _
    %998 = vsyncpa [#allocation3], 1
    %s999 = scalar_lea.sflag [#allocation3], 1
    %1000 = vsyncpa %s999, 1
    %1001 = vsyncpa [#allocation6], 1
    %1002 = vsyncpa [#allocation9], 1
    %1003 = vsyncpa [#allocation4], 1
    %s1004 = scalar_lea.sflag [#allocation4], 1
    %1005 = vsyncpa %s1004, 1

</llo_original>
